<compile_context>
chip_gen: v6e
topology: v6e:2x2x1
jax: 0.10.0
libtpu: 0.0.40
codegen_flags: <defaults>
</compile_context>

<pallas_src>
import functools

import jax
import jax.numpy as jnp
import numpy as np
from jax.experimental import pallas as pl
from jax.experimental.pallas import tpu as pltpu


# ---------------------------------------------------------------------------
# Pallas kernel: runs ALL max_iters inner iterations for one batch element.
# ---------------------------------------------------------------------------
def _encoder_kernel(x_ref, xt_ref, var0_ref, gterm_ref, cbt_ref, vbt_ref,
                    cbias_ref, vbias_ref, gwe_ref, wzrw_ref, uzr_ref, u_ref,
                    out_ref, *, max_iters, e_pad):
    f32 = jnp.float32
    dot = functools.partial(jnp.dot, preferred_element_type=f32)

    # --- hoisted, loop-invariant prep (VPU work, once per batch element) ----
    x = x_ref[0].astype(f32)                 # (Vp, Cp)  raw CNF entries
    xt = xt_ref[0].astype(f32)               # (Cp, Vp)  clause-major view
    pvm = jnp.clip(x, 0.0, 1.0)              # pos_vmat  = clamp(v_mat, 0, 1)
    nvm = jnp.clip(-x, 0.0, 1.0)             # neg_vmat  = -clamp(v_mat, -1, 0)
    pcm = jnp.clip(xt, 0.0, 1.0)             # pos_cmat
    ncm = jnp.clip(-xt, 0.0, 1.0)            # neg_cmat

    Vp = pvm.shape[0]
    Cp = pcm.shape[0]
    cbias = jnp.broadcast_to(cbias_ref[...], (Cp, e_pad))   # hoisted broadcast
    vbias = jnp.broadcast_to(vbias_ref[...], (Vp, e_pad))   # hoisted broadcast
    vars0 = var0_ref[...]                    # (Vp, Ep) initial embeddings

    def body(_, prev):                       # prev: (Vp, Ep)
        # literal embeddings: one fused matmul against [cbt0 | cbt1]
        lits = dot(prev, cbt_ref[...])                        # (Vp, 2Ep)
        pos_vars = lits[:, :e_pad]
        neg_vars = lits[:, e_pad:]
        # clause update: c = tanh(pos_cmat@y1 + neg_cmat@y2 + cb)
        c = jnp.tanh(dot(pcm, pos_vars) + dot(ncm, neg_vars) + cbias)  # (Cp,Ep)
        # clause literal embeddings: fused [vbt0 | vbt1]
        clits = dot(c, vbt_ref[...])                          # (Cp, 2Ep)
        pos_cv = clits[:, :e_pad]
        neg_cv = clits[:, e_pad:]
        # variable update
        v_emb = jnp.tanh(dot(pvm, pos_cv) + dot(nvm, neg_cv) + vbias)  # (Vp,Ep)
        # ground combiner: ground@Gw + gb was hoisted to the wrapper (gterm)
        av = jnp.tanh(gterm_ref[...] + dot(v_emb, gwe_ref[...]))
        # GRU (bias-free); [Wz|Wr|W] and [Uz|Ur] fused
        gw = dot(av, wzrw_ref[...])                           # (Vp, 3Ep)
        gu = dot(prev, uzr_ref[...])                          # (Vp, 2Ep)
        z = jax.nn.sigmoid(gw[:, :e_pad] + gu[:, :e_pad])
        r = jax.nn.sigmoid(gw[:, e_pad:2 * e_pad] + gu[:, e_pad:])
        h_tilda = jnp.tanh(gw[:, 2 * e_pad:] + dot(r * prev, u_ref[...]))
        return (1.0 - z) * prev + z * h_tilda

    unroll = max_iters if max_iters <= 8 else 1
    out_ref[0] = jax.lax.fori_loop(0, max_iters, body, vars0, unroll=unroll)


# ---------------------------------------------------------------------------
# Helpers
# ---------------------------------------------------------------------------
def _round_up(n, m):
    return ((n + m - 1) // m) * m


def _initial_annotations(V, E, G):
    # base_annotations = eye(G+1); last row duplicated; zero-padded to width E.
    base = jnp.eye(G + 1, dtype=jnp.float32)
    dup = jnp.tile(base[-1:], (V - G - 1, 1))
    ann = jnp.concatenate([base, dup], axis=0)                    # (V, G+1)
    ann = jnp.concatenate([ann, jnp.zeros((V, E - G - 1), jnp.float32)], axis=1)
    return ann                                                    # (V, E)


def _pad2(a, rows, cols):
    a = a.astype(jnp.float32)
    return jnp.pad(a, ((0, rows - a.shape[0]), (0, cols - a.shape[1])))


# ---------------------------------------------------------------------------
# Wrapper: parameter prep (padding / fusion) + pallas_call.
# ---------------------------------------------------------------------------
def batch_encoder_forward(inp, params, *, max_iters):
    B, V, C = inp.shape
    E = params["cb"].shape[-1]
    G = params["gwg"].shape[0]

    Ep = _round_up(E, 128)      # lane-dense embedding dim (padded cols stay 0)
    Vp = _round_up(V, 8)        # sublane alignment
    Cp = _round_up(C, 8)

    # CNF matrix: raw {-1,0,+1} values, exact in bf16; padded rows/cols are 0
    # so they never contribute to real clauses/variables.
    x = jnp.pad(inp.astype(jnp.bfloat16), ((0, 0), (0, Vp - V), (0, Cp - C)))
    xt = jnp.transpose(x, (0, 2, 1))                              # (B, Cp, Vp)

    # Batch-invariant initial state and (loop-invariant) ground term.
    ann = _initial_annotations(V, E, G)                           # (V, E)
    ground = ann[:, :G]                                           # (V, G)
    var0 = _pad2(ann, Vp, Ep)                                     # (Vp, Ep)
    gterm = _pad2(ground @ params["gwg"] + params["gb"], Vp, Ep)  # (Vp, Ep)

    padw = lambda a: _pad2(a, Ep, Ep)
    cbt = jnp.concatenate([padw(params["backwards_pos_neg"][0].T),
                           padw(params["backwards_pos_neg"][1].T)], axis=1)
    vbt = jnp.concatenate([padw(params["forward_pos_neg"][0].T),
                           padw(params["forward_pos_neg"][1].T)], axis=1)
    cbias = _pad2(params["cb"], 1, Ep)
    vbias = _pad2(params["vb"], 1, Ep)
    gwe = padw(params["gwe"])
    wzrw = jnp.concatenate([padw(params["wz"]), padw(params["wr"]),
                            padw(params["w"])], axis=1)           # (Ep, 3Ep)
    uzr = jnp.concatenate([padw(params["uz"]), padw(params["ur"])], axis=1)
    u = padw(params["u"])

    batched = lambda shape: pl.BlockSpec(shape, lambda b: (b, 0, 0))
    shared = lambda shape: pl.BlockSpec(shape, lambda b: (0, 0))

    kernel = functools.partial(_encoder_kernel, max_iters=max_iters, e_pad=Ep)
    out = pl.pallas_call(
        kernel,
        out_shape=jax.ShapeDtypeStruct((B, Vp, Ep), jnp.float32),
        grid=(B,),
        in_specs=[
            batched((1, Vp, Cp)),        # x    (bf16, variable-major)
            batched((1, Cp, Vp)),        # x^T  (bf16, clause-major)
            shared((Vp, Ep)),            # var0        (un-batched)
            shared((Vp, Ep)),            # ground term (un-batched)
            shared((Ep, 2 * Ep)),        # fused backwards_pos_neg^T
            shared((Ep, 2 * Ep)),        # fused forward_pos_neg^T
            shared((1, Ep)),             # clause bias
            shared((1, Ep)),             # variable bias
            shared((Ep, Ep)),            # ground-combiner state weight
            shared((Ep, 3 * Ep)),        # fused GRU [Wz|Wr|W]
            shared((Ep, 2 * Ep)),        # fused GRU [Uz|Ur]
            shared((Ep, Ep)),            # GRU U
        ],
        out_specs=batched((1, Vp, Ep)),
        compiler_params=pltpu.CompilerParams(
            dimension_semantics=("parallel",),
            vmem_limit_bytes=48 * 1024 * 1024),
    )(x, xt, var0, gterm, cbt, vbt, cbias, vbias, gwe, wzrw, uzr, u)

    # strip padding; torch.squeeze(variables) -> (B, V*E); aux_losses = zeros(B)
    out = out[:, :V, :E].reshape(B, V * E)
    return out, jnp.zeros((B,), jnp.float32)


# ---------------------------------------------------------------------------
# Pure-JAX reference (same math, unpadded) for correctness checking.
# ---------------------------------------------------------------------------
def reference_forward(inp, params, *, max_iters):
    B, V, C = inp.shape
    E = params["cb"].shape[-1]
    G = params["gwg"].shape[0]
    mm = functools.partial(jnp.matmul, precision=jax.lax.Precision.HIGHEST)

    x = inp.astype(jnp.float32)
    pvm = jnp.clip(x, 0.0, 1.0)
    nvm = -jnp.clip(x, -1.0, 0.0)
    pcm = jnp.transpose(pvm, (0, 2, 1))
    ncm = jnp.transpose(nvm, (0, 2, 1))
    ann = _initial_annotations(V, E, G)
    var = jnp.broadcast_to(ann[None], (B, V, E)).astype(jnp.float32)
    ground = var[:, :, :G]
    cbt = jnp.transpose(params["backwards_pos_neg"], (0, 2, 1))
    vbt = jnp.transpose(params["forward_pos_neg"], (0, 2, 1))

    for _ in range(max_iters):
        pos_vars = mm(var, cbt[0])
        neg_vars = mm(var, cbt[1])
        c = jnp.tanh(mm(pcm, pos_vars) + mm(ncm, neg_vars) + params["cb"])
        pos_cv = mm(c, vbt[0])
        neg_cv = mm(c, vbt[1])
        v_emb = jnp.tanh(mm(pvm, pos_cv) + mm(nvm, neg_cv) + params["vb"])
        av = jnp.tanh(mm(ground, params["gwg"]) + mm(v_emb, params["gwe"])
                      + params["gb"])
        z = jax.nn.sigmoid(mm(av, params["wz"]) + mm(var, params["uz"]))
        r = jax.nn.sigmoid(mm(av, params["wr"]) + mm(var, params["ur"]))
        h_tilda = jnp.tanh(mm(av, params["w"]) + mm(r * var, params["u"]))
        var = (1.0 - z) * var + z * h_tilda
    return var.reshape(B, V * E), jnp.zeros((B,), jnp.float32)


# ---------------------------------------------------------------------------
# Deterministic parameter construction (synthetic, no checkpoint).
# ---------------------------------------------------------------------------
def make_params(key, E, G):
    ks = jax.random.split(key, 16)
    n = lambda k, shape, s=1.0: (s * jax.random.normal(k, shape)).astype(jnp.float32)
    lin = 1.0 / np.sqrt(E)
    return {
        "forward_pos_neg": n(ks[0], (2, E, E)),
        "backwards_pos_neg": n(ks[1], (2, E, E)),
        "cb": n(ks[2], (1, E)),
        "vb": n(ks[3], (1, E)),
        # ground combiner Linear(G+E -> E), split into ground/state parts
        "gwg": n(ks[4], (G, E), lin),
        "gwe": n(ks[5], (E, E), lin),
        "gb": n(ks[6], (1, E), lin),
        # GRU linears (stored as (in, out), i.e. already W.T), no biases
        "wz": n(ks[7], (E, E), lin), "uz": n(ks[8], (E, E), lin),
        "wr": n(ks[9], (E, E), lin), "ur": n(ks[10], (E, E), lin),
        "w": n(ks[11], (E, E), lin), "u": n(ks[12], (E, E), lin),
    }


if __name__ == "__main__":
    # small, module-consistent shapes:
    #   batch=2, max_variables=8, max_clauses=6,
    #   embedding_dim=8, num_ground_variables=ground_dim=4, max_iters=2
    B, V, C, E, G = 2, 8, 6, 8, 4
    MAX_ITERS = 2

    root = jax.random.PRNGKey(0)
    kp, kx = jax.random.split(root)
    params = make_params(kp, E, G)
    # CNF matrix with entries in {-1, 0, +1}
    inp = jax.random.randint(kx, (B, V, C), -1, 2).astype(jnp.float32)

    out, aux = batch_encoder_forward(inp, params, max_iters=MAX_ITERS)
    out = jax.block_until_ready(out)
    aux = jax.block_until_ready(aux)

    ref, _ = reference_forward(inp, params, max_iters=MAX_ITERS)
    np.testing.assert_allclose(np.asarray(out), np.asarray(ref),
                               rtol=5e-3, atol=5e-3)
    assert out.shape == (B, V * E) and aux.shape == (B,)
    print("KERNEL_OK")
</pallas_src>

<mosaic_0001>
module attributes {stable_mosaic.version = 11 : i64} {
  func.func @_encoder_kernel(%arg0: i32, %arg1: memref<1x8x8xbf16, #tpu.memory_space<vmem>>, %arg2: memref<1x8x8xbf16, #tpu.memory_space<vmem>>, %arg3: memref<8x128xf32, #tpu.memory_space<vmem>>, %arg4: memref<8x128xf32, #tpu.memory_space<vmem>>, %arg5: memref<128x256xf32, #tpu.memory_space<vmem>>, %arg6: memref<128x256xf32, #tpu.memory_space<vmem>>, %arg7: memref<1x128xf32, #tpu.memory_space<vmem>>, %arg8: memref<1x128xf32, #tpu.memory_space<vmem>>, %arg9: memref<128x128xf32, #tpu.memory_space<vmem>>, %arg10: memref<128x384xf32, #tpu.memory_space<vmem>>, %arg11: memref<128x256xf32, #tpu.memory_space<vmem>>, %arg12: memref<128x128xf32, #tpu.memory_space<vmem>>, %arg13: memref<1x8x128xf32, #tpu.memory_space<vmem>>) attributes {dimension_semantics = [#tpu.dimension_semantics<parallel>], iteration_bounds = array<i64: 2>, scalar_prefetch = 0 : i64, scratch_operands = 0 : i64, tpu.core_type = #tpu.core_type<tc>, window_params = [{transform_indices = @transform_0, window_bounds = array<i64: 1, 8, 8>}, {transform_indices = @transform_1, window_bounds = array<i64: 1, 8, 8>}, {pipeline_mode = #tpu.pipeline_mode<synchronous>, transform_indices = @transform_2, window_bounds = array<i64: 8, 128>}, {pipeline_mode = #tpu.pipeline_mode<synchronous>, transform_indices = @transform_3, window_bounds = array<i64: 8, 128>}, {pipeline_mode = #tpu.pipeline_mode<synchronous>, transform_indices = @transform_4, window_bounds = array<i64: 128, 256>}, {pipeline_mode = #tpu.pipeline_mode<synchronous>, transform_indices = @transform_5, window_bounds = array<i64: 128, 256>}, {pipeline_mode = #tpu.pipeline_mode<synchronous>, transform_indices = @transform_6, window_bounds = array<i64: 1, 128>}, {pipeline_mode = #tpu.pipeline_mode<synchronous>, transform_indices = @transform_7, window_bounds = array<i64: 1, 128>}, {pipeline_mode = #tpu.pipeline_mode<synchronous>, transform_indices = @transform_8, window_bounds = array<i64: 128, 128>}, {pipeline_mode = #tpu.pipeline_mode<synchronous>, transform_indices = @transform_9, window_bounds = array<i64: 128, 384>}, {pipeline_mode = #tpu.pipeline_mode<synchronous>, transform_indices = @transform_10, window_bounds = array<i64: 128, 256>}, {pipeline_mode = #tpu.pipeline_mode<synchronous>, transform_indices = @transform_11, window_bounds = array<i64: 128, 128>}, {transform_indices = @transform_12, window_bounds = array<i64: 1, 8, 128>}]} {
    %c0 = arith.constant 0 : index
    %c0_0 = arith.constant 0 : index
    %c0_1 = arith.constant 0 : index
    %0 = vector.load %arg1[%c0, %c0_0, %c0_1] : memref<1x8x8xbf16, #tpu.memory_space<vmem>>, vector<1x8x8xbf16>
    %1 = vector.shape_cast %0 : vector<1x8x8xbf16> to vector<8x8xbf16>
    %2 = arith.extf %1 : vector<8x8xbf16> to vector<8x8xf32>
    %c0_2 = arith.constant 0 : index
    %c0_3 = arith.constant 0 : index
    %c0_4 = arith.constant 0 : index
    %3 = vector.load %arg2[%c0_2, %c0_3, %c0_4] : memref<1x8x8xbf16, #tpu.memory_space<vmem>>, vector<1x8x8xbf16>
    %4 = vector.shape_cast %3 : vector<1x8x8xbf16> to vector<8x8xbf16>
    %5 = arith.extf %4 : vector<8x8xbf16> to vector<8x8xf32>
    %cst = arith.constant 0.000000e+00 : f32
    %cst_5 = arith.constant 1.000000e+00 : f32
    %6 = vector.broadcast %cst : f32 to vector<8x8xf32>
    %7 = arith.maximumf %6, %2 : vector<8x8xf32>
    %8 = vector.broadcast %cst_5 : f32 to vector<8x8xf32>
    %9 = arith.minimumf %8, %7 : vector<8x8xf32>
    %cst_6 = arith.constant 0.000000e+00 : f32
    %10 = vector.broadcast %cst_6 : f32 to vector<8x8xf32>
    %11 = arith.subf %10, %2 : vector<8x8xf32>
    %cst_7 = arith.constant 0.000000e+00 : f32
    %cst_8 = arith.constant 1.000000e+00 : f32
    %12 = vector.broadcast %cst_7 : f32 to vector<8x8xf32>
    %13 = arith.maximumf %12, %11 : vector<8x8xf32>
    %14 = vector.broadcast %cst_8 : f32 to vector<8x8xf32>
    %15 = arith.minimumf %14, %13 : vector<8x8xf32>
    %cst_9 = arith.constant 0.000000e+00 : f32
    %cst_10 = arith.constant 1.000000e+00 : f32
    %16 = vector.broadcast %cst_9 : f32 to vector<8x8xf32>
    %17 = arith.maximumf %16, %5 : vector<8x8xf32>
    %18 = vector.broadcast %cst_10 : f32 to vector<8x8xf32>
    %19 = arith.minimumf %18, %17 : vector<8x8xf32>
    %cst_11 = arith.constant 0.000000e+00 : f32
    %20 = vector.broadcast %cst_11 : f32 to vector<8x8xf32>
    %21 = arith.subf %20, %5 : vector<8x8xf32>
    %cst_12 = arith.constant 0.000000e+00 : f32
    %cst_13 = arith.constant 1.000000e+00 : f32
    %22 = vector.broadcast %cst_12 : f32 to vector<8x8xf32>
    %23 = arith.maximumf %22, %21 : vector<8x8xf32>
    %24 = vector.broadcast %cst_13 : f32 to vector<8x8xf32>
    %25 = arith.minimumf %24, %23 : vector<8x8xf32>
    %c0_14 = arith.constant 0 : index
    %c0_15 = arith.constant 0 : index
    %26 = vector.load %arg7[%c0_14, %c0_15] : memref<1x128xf32, #tpu.memory_space<vmem>>, vector<1x128xf32>
    %27 = vector.shape_cast %26 : vector<1x128xf32> to vector<1x128xf32>
    %28 = vector.broadcast %27 : vector<1x128xf32> to vector<8x128xf32>
    %c0_16 = arith.constant 0 : index
    %c0_17 = arith.constant 0 : index
    %29 = vector.load %arg8[%c0_16, %c0_17] : memref<1x128xf32, #tpu.memory_space<vmem>>, vector<1x128xf32>
    %30 = vector.shape_cast %29 : vector<1x128xf32> to vector<1x128xf32>
    %31 = vector.broadcast %30 : vector<1x128xf32> to vector<8x128xf32>
    %c0_18 = arith.constant 0 : index
    %c0_19 = arith.constant 0 : index
    %32 = vector.load %arg3[%c0_18, %c0_19] : memref<8x128xf32, #tpu.memory_space<vmem>>, vector<8x128xf32>
    %c0_i32 = arith.constant 0 : i32
    %c0_20 = arith.constant 0 : index
    %c0_21 = arith.constant 0 : index
    %33 = vector.load %arg5[%c0_20, %c0_21] : memref<128x256xf32, #tpu.memory_space<vmem>>, vector<128x256xf32>
    %cst_22 = arith.constant dense<0.000000e+00> : vector<8x256xf32>
    %34 = tpu.matmul %32, %33, %cst_22 {dimension_numbers = #tpu.dot_dimension_numbers<[1], [0], [0], [1], [0, 0, 1, 1], [], []>} : vector<8x128xf32>, vector<128x256xf32>, vector<8x256xf32> -> vector<8x256xf32>
    %35 = vector.extract_strided_slice %34 {offsets = [0, 0], sizes = [8, 128], strides = [1, 1]} : vector<8x256xf32> to vector<8x128xf32>
    %36 = vector.extract_strided_slice %34 {offsets = [0, 128], sizes = [8, 128], strides = [1, 1]} : vector<8x256xf32> to vector<8x128xf32>
    %cst_23 = arith.constant dense<0.000000e+00> : vector<8x128xf32>
    %37 = tpu.matmul %19, %35, %cst_23 {dimension_numbers = #tpu.dot_dimension_numbers<[1], [0], [0], [1], [0, 0, 1, 1], [], []>} : vector<8x8xf32>, vector<8x128xf32>, vector<8x128xf32> -> vector<8x128xf32>
    %cst_24 = arith.constant dense<0.000000e+00> : vector<8x128xf32>
    %38 = tpu.matmul %25, %36, %cst_24 {dimension_numbers = #tpu.dot_dimension_numbers<[1], [0], [0], [1], [0, 0, 1, 1], [], []>} : vector<8x8xf32>, vector<8x128xf32>, vector<8x128xf32> -> vector<8x128xf32>
    %39 = arith.addf %37, %38 : vector<8x128xf32>
    %40 = arith.addf %39, %28 : vector<8x128xf32>
    %41 = math.tanh %40 : vector<8x128xf32>
    %c0_25 = arith.constant 0 : index
    %c0_26 = arith.constant 0 : index
    %42 = vector.load %arg6[%c0_25, %c0_26] : memref<128x256xf32, #tpu.memory_space<vmem>>, vector<128x256xf32>
    %cst_27 = arith.constant dense<0.000000e+00> : vector<8x256xf32>
    %43 = tpu.matmul %41, %42, %cst_27 {dimension_numbers = #tpu.dot_dimension_numbers<[1], [0], [0], [1], [0, 0, 1, 1], [], []>} : vector<8x128xf32>, vector<128x256xf32>, vector<8x256xf32> -> vector<8x256xf32>
    %44 = vector.extract_strided_slice %43 {offsets = [0, 0], sizes = [8, 128], strides = [1, 1]} : vector<8x256xf32> to vector<8x128xf32>
    %45 = vector.extract_strided_slice %43 {offsets = [0, 128], sizes = [8, 128], strides = [1, 1]} : vector<8x256xf32> to vector<8x128xf32>
    %cst_28 = arith.constant dense<0.000000e+00> : vector<8x128xf32>
    %46 = tpu.matmul %9, %44, %cst_28 {dimension_numbers = #tpu.dot_dimension_numbers<[1], [0], [0], [1], [0, 0, 1, 1], [], []>} : vector<8x8xf32>, vector<8x128xf32>, vector<8x128xf32> -> vector<8x128xf32>
    %cst_29 = arith.constant dense<0.000000e+00> : vector<8x128xf32>
    %47 = tpu.matmul %15, %45, %cst_29 {dimension_numbers = #tpu.dot_dimension_numbers<[1], [0], [0], [1], [0, 0, 1, 1], [], []>} : vector<8x8xf32>, vector<8x128xf32>, vector<8x128xf32> -> vector<8x128xf32>
    %48 = arith.addf %46, %47 : vector<8x128xf32>
    %49 = arith.addf %48, %31 : vector<8x128xf32>
    %50 = math.tanh %49 : vector<8x128xf32>
    %c0_30 = arith.constant 0 : index
    %c0_31 = arith.constant 0 : index
    %51 = vector.load %arg4[%c0_30, %c0_31] : memref<8x128xf32, #tpu.memory_space<vmem>>, vector<8x128xf32>
    %c0_32 = arith.constant 0 : index
    %c0_33 = arith.constant 0 : index
    %52 = vector.load %arg9[%c0_32, %c0_33] : memref<128x128xf32, #tpu.memory_space<vmem>>, vector<128x128xf32>
    %cst_34 = arith.constant dense<0.000000e+00> : vector<8x128xf32>
    %53 = tpu.matmul %50, %52, %cst_34 {dimension_numbers = #tpu.dot_dimension_numbers<[1], [0], [0], [1], [0, 0, 1, 1], [], []>} : vector<8x128xf32>, vector<128x128xf32>, vector<8x128xf32> -> vector<8x128xf32>
    %54 = arith.addf %51, %53 : vector<8x128xf32>
    %55 = math.tanh %54 : vector<8x128xf32>
    %c0_35 = arith.constant 0 : index
    %c0_36 = arith.constant 0 : index
    %56 = vector.load %arg10[%c0_35, %c0_36] : memref<128x384xf32, #tpu.memory_space<vmem>>, vector<128x384xf32>
    %cst_37 = arith.constant dense<0.000000e+00> : vector<8x384xf32>
    %57 = tpu.matmul %55, %56, %cst_37 {dimension_numbers = #tpu.dot_dimension_numbers<[1], [0], [0], [1], [0, 0, 1, 1], [], []>} : vector<8x128xf32>, vector<128x384xf32>, vector<8x384xf32> -> vector<8x384xf32>
    %c0_38 = arith.constant 0 : index
    %c0_39 = arith.constant 0 : index
    %58 = vector.load %arg11[%c0_38, %c0_39] : memref<128x256xf32, #tpu.memory_space<vmem>>, vector<128x256xf32>
    %cst_40 = arith.constant dense<0.000000e+00> : vector<8x256xf32>
    %59 = tpu.matmul %32, %58, %cst_40 {dimension_numbers = #tpu.dot_dimension_numbers<[1], [0], [0], [1], [0, 0, 1, 1], [], []>} : vector<8x128xf32>, vector<128x256xf32>, vector<8x256xf32> -> vector<8x256xf32>
    %60 = vector.extract_strided_slice %57 {offsets = [0, 0], sizes = [8, 128], strides = [1, 1]} : vector<8x384xf32> to vector<8x128xf32>
    %61 = vector.extract_strided_slice %59 {offsets = [0, 0], sizes = [8, 128], strides = [1, 1]} : vector<8x256xf32> to vector<8x128xf32>
    %62 = arith.addf %60, %61 : vector<8x128xf32>
    %63 = arith.negf %62 : vector<8x128xf32>
    %64 = math.exp %63 : vector<8x128xf32>
    %cst_41 = arith.constant 1.000000e+00 : f32
    %65 = vector.broadcast %cst_41 : f32 to vector<8x128xf32>
    %66 = arith.addf %65, %64 : vector<8x128xf32>
    %67 = arith.divf %65, %66 : vector<8x128xf32>
    %68 = vector.extract_strided_slice %57 {offsets = [0, 128], sizes = [8, 128], strides = [1, 1]} : vector<8x384xf32> to vector<8x128xf32>
    %69 = vector.extract_strided_slice %59 {offsets = [0, 128], sizes = [8, 128], strides = [1, 1]} : vector<8x256xf32> to vector<8x128xf32>
    %70 = arith.addf %68, %69 : vector<8x128xf32>
    %71 = arith.negf %70 : vector<8x128xf32>
    %72 = math.exp %71 : vector<8x128xf32>
    %cst_42 = arith.constant 1.000000e+00 : f32
    %73 = vector.broadcast %cst_42 : f32 to vector<8x128xf32>
    %74 = arith.addf %73, %72 : vector<8x128xf32>
    %75 = arith.divf %73, %74 : vector<8x128xf32>
    %76 = vector.extract_strided_slice %57 {offsets = [0, 256], sizes = [8, 128], strides = [1, 1]} : vector<8x384xf32> to vector<8x128xf32>
    %77 = arith.mulf %75, %32 : vector<8x128xf32>
    %c0_43 = arith.constant 0 : index
    %c0_44 = arith.constant 0 : index
    %78 = vector.load %arg12[%c0_43, %c0_44] : memref<128x128xf32, #tpu.memory_space<vmem>>, vector<128x128xf32>
    %cst_45 = arith.constant dense<0.000000e+00> : vector<8x128xf32>
    %79 = tpu.matmul %77, %78, %cst_45 {dimension_numbers = #tpu.dot_dimension_numbers<[1], [0], [0], [1], [0, 0, 1, 1], [], []>} : vector<8x128xf32>, vector<128x128xf32>, vector<8x128xf32> -> vector<8x128xf32>
    %80 = arith.addf %76, %79 : vector<8x128xf32>
    %81 = math.tanh %80 : vector<8x128xf32>
    %cst_46 = arith.constant 1.000000e+00 : f32
    %82 = vector.broadcast %cst_46 : f32 to vector<8x128xf32>
    %83 = arith.subf %82, %67 : vector<8x128xf32>
    %84 = arith.mulf %83, %32 : vector<8x128xf32>
    %85 = arith.mulf %67, %81 : vector<8x128xf32>
    %86 = arith.addf %84, %85 : vector<8x128xf32>
    %c1_i32 = arith.constant 1 : i32
    %c0_47 = arith.constant 0 : index
    %c0_48 = arith.constant 0 : index
    %87 = vector.load %arg5[%c0_47, %c0_48] : memref<128x256xf32, #tpu.memory_space<vmem>>, vector<128x256xf32>
    %cst_49 = arith.constant dense<0.000000e+00> : vector<8x256xf32>
    %88 = tpu.matmul %86, %87, %cst_49 {dimension_numbers = #tpu.dot_dimension_numbers<[1], [0], [0], [1], [0, 0, 1, 1], [], []>} : vector<8x128xf32>, vector<128x256xf32>, vector<8x256xf32> -> vector<8x256xf32>
    %89 = vector.extract_strided_slice %88 {offsets = [0, 0], sizes = [8, 128], strides = [1, 1]} : vector<8x256xf32> to vector<8x128xf32>
    %90 = vector.extract_strided_slice %88 {offsets = [0, 128], sizes = [8, 128], strides = [1, 1]} : vector<8x256xf32> to vector<8x128xf32>
    %cst_50 = arith.constant dense<0.000000e+00> : vector<8x128xf32>
    %91 = tpu.matmul %19, %89, %cst_50 {dimension_numbers = #tpu.dot_dimension_numbers<[1], [0], [0], [1], [0, 0, 1, 1], [], []>} : vector<8x8xf32>, vector<8x128xf32>, vector<8x128xf32> -> vector<8x128xf32>
    %cst_51 = arith.constant dense<0.000000e+00> : vector<8x128xf32>
    %92 = tpu.matmul %25, %90, %cst_51 {dimension_numbers = #tpu.dot_dimension_numbers<[1], [0], [0], [1], [0, 0, 1, 1], [], []>} : vector<8x8xf32>, vector<8x128xf32>, vector<8x128xf32> -> vector<8x128xf32>
    %93 = arith.addf %91, %92 : vector<8x128xf32>
    %94 = arith.addf %93, %28 : vector<8x128xf32>
    %95 = math.tanh %94 : vector<8x128xf32>
    %c0_52 = arith.constant 0 : index
    %c0_53 = arith.constant 0 : index
    %96 = vector.load %arg6[%c0_52, %c0_53] : memref<128x256xf32, #tpu.memory_space<vmem>>, vector<128x256xf32>
    %cst_54 = arith.constant dense<0.000000e+00> : vector<8x256xf32>
    %97 = tpu.matmul %95, %96, %cst_54 {dimension_numbers = #tpu.dot_dimension_numbers<[1], [0], [0], [1], [0, 0, 1, 1], [], []>} : vector<8x128xf32>, vector<128x256xf32>, vector<8x256xf32> -> vector<8x256xf32>
    %98 = vector.extract_strided_slice %97 {offsets = [0, 0], sizes = [8, 128], strides = [1, 1]} : vector<8x256xf32> to vector<8x128xf32>
    %99 = vector.extract_strided_slice %97 {offsets = [0, 128], sizes = [8, 128], strides = [1, 1]} : vector<8x256xf32> to vector<8x128xf32>
    %cst_55 = arith.constant dense<0.000000e+00> : vector<8x128xf32>
    %100 = tpu.matmul %9, %98, %cst_55 {dimension_numbers = #tpu.dot_dimension_numbers<[1], [0], [0], [1], [0, 0, 1, 1], [], []>} : vector<8x8xf32>, vector<8x128xf32>, vector<8x128xf32> -> vector<8x128xf32>
    %cst_56 = arith.constant dense<0.000000e+00> : vector<8x128xf32>
    %101 = tpu.matmul %15, %99, %cst_56 {dimension_numbers = #tpu.dot_dimension_numbers<[1], [0], [0], [1], [0, 0, 1, 1], [], []>} : vector<8x8xf32>, vector<8x128xf32>, vector<8x128xf32> -> vector<8x128xf32>
    %102 = arith.addf %100, %101 : vector<8x128xf32>
    %103 = arith.addf %102, %31 : vector<8x128xf32>
    %104 = math.tanh %103 : vector<8x128xf32>
    %c0_57 = arith.constant 0 : index
    %c0_58 = arith.constant 0 : index
    %105 = vector.load %arg4[%c0_57, %c0_58] : memref<8x128xf32, #tpu.memory_space<vmem>>, vector<8x128xf32>
    %c0_59 = arith.constant 0 : index
    %c0_60 = arith.constant 0 : index
    %106 = vector.load %arg9[%c0_59, %c0_60] : memref<128x128xf32, #tpu.memory_space<vmem>>, vector<128x128xf32>
    %cst_61 = arith.constant dense<0.000000e+00> : vector<8x128xf32>
    %107 = tpu.matmul %104, %106, %cst_61 {dimension_numbers = #tpu.dot_dimension_numbers<[1], [0], [0], [1], [0, 0, 1, 1], [], []>} : vector<8x128xf32>, vector<128x128xf32>, vector<8x128xf32> -> vector<8x128xf32>
    %108 = arith.addf %105, %107 : vector<8x128xf32>
    %109 = math.tanh %108 : vector<8x128xf32>
    %c0_62 = arith.constant 0 : index
    %c0_63 = arith.constant 0 : index
    %110 = vector.load %arg10[%c0_62, %c0_63] : memref<128x384xf32, #tpu.memory_space<vmem>>, vector<128x384xf32>
    %cst_64 = arith.constant dense<0.000000e+00> : vector<8x384xf32>
    %111 = tpu.matmul %109, %110, %cst_64 {dimension_numbers = #tpu.dot_dimension_numbers<[1], [0], [0], [1], [0, 0, 1, 1], [], []>} : vector<8x128xf32>, vector<128x384xf32>, vector<8x384xf32> -> vector<8x384xf32>
    %c0_65 = arith.constant 0 : index
    %c0_66 = arith.constant 0 : index
    %112 = vector.load %arg11[%c0_65, %c0_66] : memref<128x256xf32, #tpu.memory_space<vmem>>, vector<128x256xf32>
    %cst_67 = arith.constant dense<0.000000e+00> : vector<8x256xf32>
    %113 = tpu.matmul %86, %112, %cst_67 {dimension_numbers = #tpu.dot_dimension_numbers<[1], [0], [0], [1], [0, 0, 1, 1], [], []>} : vector<8x128xf32>, vector<128x256xf32>, vector<8x256xf32> -> vector<8x256xf32>
    %114 = vector.extract_strided_slice %111 {offsets = [0, 0], sizes = [8, 128], strides = [1, 1]} : vector<8x384xf32> to vector<8x128xf32>
    %115 = vector.extract_strided_slice %113 {offsets = [0, 0], sizes = [8, 128], strides = [1, 1]} : vector<8x256xf32> to vector<8x128xf32>
    %116 = arith.addf %114, %115 : vector<8x128xf32>
    %117 = arith.negf %116 : vector<8x128xf32>
    %118 = math.exp %117 : vector<8x128xf32>
    %cst_68 = arith.constant 1.000000e+00 : f32
    %119 = vector.broadcast %cst_68 : f32 to vector<8x128xf32>
    %120 = arith.addf %119, %118 : vector<8x128xf32>
    %121 = arith.divf %119, %120 : vector<8x128xf32>
    %122 = vector.extract_strided_slice %111 {offsets = [0, 128], sizes = [8, 128], strides = [1, 1]} : vector<8x384xf32> to vector<8x128xf32>
    %123 = vector.extract_strided_slice %113 {offsets = [0, 128], sizes = [8, 128], strides = [1, 1]} : vector<8x256xf32> to vector<8x128xf32>
    %124 = arith.addf %122, %123 : vector<8x128xf32>
    %125 = arith.negf %124 : vector<8x128xf32>
    %126 = math.exp %125 : vector<8x128xf32>
    %cst_69 = arith.constant 1.000000e+00 : f32
    %127 = vector.broadcast %cst_69 : f32 to vector<8x128xf32>
    %128 = arith.addf %127, %126 : vector<8x128xf32>
    %129 = arith.divf %127, %128 : vector<8x128xf32>
    %130 = vector.extract_strided_slice %111 {offsets = [0, 256], sizes = [8, 128], strides = [1, 1]} : vector<8x384xf32> to vector<8x128xf32>
    %131 = arith.mulf %129, %86 : vector<8x128xf32>
    %c0_70 = arith.constant 0 : index
    %c0_71 = arith.constant 0 : index
    %132 = vector.load %arg12[%c0_70, %c0_71] : memref<128x128xf32, #tpu.memory_space<vmem>>, vector<128x128xf32>
    %cst_72 = arith.constant dense<0.000000e+00> : vector<8x128xf32>
    %133 = tpu.matmul %131, %132, %cst_72 {dimension_numbers = #tpu.dot_dimension_numbers<[1], [0], [0], [1], [0, 0, 1, 1], [], []>} : vector<8x128xf32>, vector<128x128xf32>, vector<8x128xf32> -> vector<8x128xf32>
    %134 = arith.addf %130, %133 : vector<8x128xf32>
    %135 = math.tanh %134 : vector<8x128xf32>
    %cst_73 = arith.constant 1.000000e+00 : f32
    %136 = vector.broadcast %cst_73 : f32 to vector<8x128xf32>
    %137 = arith.subf %136, %121 : vector<8x128xf32>
    %138 = arith.mulf %137, %86 : vector<8x128xf32>
    %139 = arith.mulf %121, %135 : vector<8x128xf32>
    %140 = arith.addf %138, %139 : vector<8x128xf32>
    %c0_74 = arith.constant 0 : index
    %c0_75 = arith.constant 0 : index
    %c0_76 = arith.constant 0 : index
    %141 = vector.load %arg13[%c0_74, %c0_75, %c0_76] : memref<1x8x128xf32, #tpu.memory_space<vmem>>, vector<1x8x128xf32>
    %142 = vector.shape_cast %141 : vector<1x8x128xf32> to vector<8x128xf32>
    %143 = vector.shape_cast %140 : vector<8x128xf32> to vector<1x8x128xf32>
    tpu.vector_store %arg13[%c0_74, %c0_75, %c0_76], %143 {strides = array<i32>} : memref<1x8x128xf32, #tpu.memory_space<vmem>>, vector<1x8x128xf32>,
    return
  }
  func.func @transform_0(%arg0: i32) -> (i32, i32, i32) {
    %c0_i32 = arith.constant 0 : i32
    %c0_i32_0 = arith.constant 0 : i32
    %c0_i32_1 = arith.constant 0 : i32
    return %arg0, %c0_i32, %c0_i32_0 : i32, i32, i32
  }
  func.func @transform_1(%arg0: i32) -> (i32, i32, i32) {
    %c0_i32 = arith.constant 0 : i32
    %c0_i32_0 = arith.constant 0 : i32
    %c0_i32_1 = arith.constant 0 : i32
    return %arg0, %c0_i32, %c0_i32_0 : i32, i32, i32
  }
  func.func @transform_2(%arg0: i32) -> (i32, i32) {
    %c0_i32 = arith.constant 0 : i32
    %c0_i32_0 = arith.constant 0 : i32
    %c0_i32_1 = arith.constant 0 : i32
    return %c0_i32, %c0_i32_0 : i32, i32
  }
  func.func @transform_3(%arg0: i32) -> (i32, i32) {
    %c0_i32 = arith.constant 0 : i32
    %c0_i32_0 = arith.constant 0 : i32
    %c0_i32_1 = arith.constant 0 : i32
    return %c0_i32, %c0_i32_0 : i32, i32
  }
  func.func @transform_4(%arg0: i32) -> (i32, i32) {
    %c0_i32 = arith.constant 0 : i32
    %c0_i32_0 = arith.constant 0 : i32
    %c0_i32_1 = arith.constant 0 : i32
    return %c0_i32, %c0_i32_0 : i32, i32
  }
  func.func @transform_5(%arg0: i32) -> (i32, i32) {
    %c0_i32 = arith.constant 0 : i32
    %c0_i32_0 = arith.constant 0 : i32
    %c0_i32_1 = arith.constant 0 : i32
    return %c0_i32, %c0_i32_0 : i32, i32
  }
  func.func @transform_6(%arg0: i32) -> (i32, i32) {
    %c0_i32 = arith.constant 0 : i32
    %c0_i32_0 = arith.constant 0 : i32
    %c0_i32_1 = arith.constant 0 : i32
    return %c0_i32, %c0_i32_0 : i32, i32
  }
  func.func @transform_7(%arg0: i32) -> (i32, i32) {
    %c0_i32 = arith.constant 0 : i32
    %c0_i32_0 = arith.constant 0 : i32
    %c0_i32_1 = arith.constant 0 : i32
    return %c0_i32, %c0_i32_0 : i32, i32
  }
  func.func @transform_8(%arg0: i32) -> (i32, i32) {
    %c0_i32 = arith.constant 0 : i32
    %c0_i32_0 = arith.constant 0 : i32
    %c0_i32_1 = arith.constant 0 : i32
    return %c0_i32, %c0_i32_0 : i32, i32
  }
  func.func @transform_9(%arg0: i32) -> (i32, i32) {
    %c0_i32 = arith.constant 0 : i32
    %c0_i32_0 = arith.constant 0 : i32
    %c0_i32_1 = arith.constant 0 : i32
    return %c0_i32, %c0_i32_0 : i32, i32
  }
  func.func @transform_10(%arg0: i32) -> (i32, i32) {
    %c0_i32 = arith.constant 0 : i32
    %c0_i32_0 = arith.constant 0 : i32
    %c0_i32_1 = arith.constant 0 : i32
    return %c0_i32, %c0_i32_0 : i32, i32
  }
  func.func @transform_11(%arg0: i32) -> (i32, i32) {
    %c0_i32 = arith.constant 0 : i32
    %c0_i32_0 = arith.constant 0 : i32
    %c0_i32_1 = arith.constant 0 : i32
    return %c0_i32, %c0_i32_0 : i32, i32
  }
  func.func @transform_12(%arg0: i32) -> (i32, i32, i32) {
    %c0_i32 = arith.constant 0 : i32
    %c0_i32_0 = arith.constant 0 : i32
    %c0_i32_1 = arith.constant 0 : i32
    return %arg0, %c0_i32, %c0_i32_0 : i32, i32, i32
  }
}

</mosaic_0001>

<llo_original>
// kernel: tpu_custom_call.1
$region0: #{tpu_custom_call.1}
  #allocation0 [shape = 'u32[]', space=smem, size = 0x4, offset = 0x4, fixed_abs, tag = 'smem constant byte address 0x4 - core index']
  #allocation1 [shape = 'u32[144,128]{1,0:T(1,128)}', space=vmem, size = 0x12000, scoped, tag = 'internal scratch']
  %s0 = inlined_call_operand.hbm [shape: bf16[2,8,8], index: 0, kind: input, shape index: {}]
  %s1 = inlined_call_operand.hbm [shape: bf16[2,8,8], index: 1, kind: input, shape index: {}]
  %s2 = inlined_call_operand.hbm [shape: f32[8,128], index: 2, kind: input, shape index: {}]
  %s3 = inlined_call_operand.hbm [shape: f32[8,128], index: 3, kind: input, shape index: {}]
  %s4 = inlined_call_operand.hbm [shape: f32[128,256], index: 4, kind: input, shape index: {}]
  %s5 = inlined_call_operand.hbm [shape: f32[128,256], index: 5, kind: input, shape index: {}]
  %s6 = inlined_call_operand.vmem [shape: f32[1,128], index: 6, kind: input, shape index: {}]
  %s7 = inlined_call_operand.vmem [shape: f32[1,128], index: 7, kind: input, shape index: {}]
  %s8 = inlined_call_operand.hbm [shape: f32[128,128], index: 8, kind: input, shape index: {}]
  %s9 = inlined_call_operand.hbm [shape: f32[128,384], index: 9, kind: input, shape index: {}]
  %s10 = inlined_call_operand.hbm [shape: f32[128,256], index: 10, kind: input, shape index: {}]
  %s11 = inlined_call_operand.hbm [shape: f32[128,128], index: 11, kind: input, shape index: {}]
  %s12 = inlined_call_operand.hbm [shape: f32[2,8,128], index: 12, kind: output, shape index: {}]
  %s13 = sld [smem:[#allocation0]]
  $region121: #{tpu_custom_call.1} parent=0
    _
  %s15 = ssub.s32 1, %s13
  %s16 = scalar_select 0, %s15, %s13
  $region1: #{tpu_custom_call.1} parent=0
    #allocation2 [shape = 'u8[4096]{0}', space=vmem, size = 0x1000, scoped, tag = 'input window, operand 0']
    #allocation3 [shape = 's32[2]{0}', space=sflag, size = 0x8, scoped, tag = 'scoped memory for tpu_custom_call.1']
    #allocation4 [shape = 's32[2]{0}', space=sflag, size = 0x8, scoped, tag = 'scoped memory for tpu_custom_call.1']
    #allocation5 [shape = 'u8[4096]{0}', space=vmem, size = 0x1000, scoped, tag = 'input window, operand 1']
    #allocation6 [shape = 's32[2]{0}', space=sflag, size = 0x8, scoped, tag = 'scoped memory for tpu_custom_call.1']
    #allocation7 [shape = 'u8[4096]{0}', space=vmem, size = 0x1000, scoped, tag = 'input window, operand 2, single buffered']
    #allocation8 [shape = 'u8[4096]{0}', space=vmem, size = 0x1000, scoped, tag = 'input window, operand 3, single buffered']
    #allocation9 [shape = 's32[1]{0}', space=sflag, size = 0x4, scoped, tag = 'scoped memory for tpu_custom_call.1']
    #allocation10 [shape = 'u8[131072]{0}', space=vmem, size = 0x20000, scoped, tag = 'input window, operand 4, single buffered']
    #allocation11 [shape = 'u8[131072]{0}', space=vmem, size = 0x20000, scoped, tag = 'input window, operand 5, single buffered']
    #allocation12 [shape = 's32[1]{0}', space=sflag, size = 0x4, scoped, tag = 'scoped memory for tpu_custom_call.1']
    #allocation13 [shape = 'u8[65536]{0}', space=vmem, size = 0x10000, scoped, tag = 'input window, operand 8, single buffered']
    #allocation14 [shape = 'u8[196608]{0}', space=vmem, size = 0x30000, scoped, tag = 'input window, operand 9, single buffered']
    #allocation15 [shape = 's32[1]{0}', space=sflag, size = 0x4, scoped, tag = 'scoped memory for tpu_custom_call.1']
    #allocation16 [shape = 'u8[131072]{0}', space=vmem, size = 0x20000, scoped, tag = 'input window, operand 10, single buffered']
    #allocation17 [shape = 'u8[65536]{0}', space=vmem, size = 0x10000, scoped, tag = 'input window, operand 11, single buffered']
    #allocation18 [shape = 's32[1]{0}', space=sflag, size = 0x4, scoped, tag = 'scoped memory for tpu_custom_call.1']
    #allocation19 [shape = 'u8[8192]{0}', space=vmem, size = 0x2000, scoped, tag = 'output window, operand 0']
    %17 = vsyncpa [#allocation3], 0
    %s18 = scalar_lea.sflag [#allocation3], 1
    %19 = vsyncpa %s18, 0
    %20 = vsyncpa [#allocation6], 0
    %s21 = scalar_lea.sflag [#allocation6], 1
    %22 = vsyncpa %s21, 0
    %23 = vsyncpa [#allocation9], 0
    %24 = vsyncpa [#allocation12], 0
    %25 = vsyncpa [#allocation15], 0
    %26 = vsyncpa [#allocation18], 0
    %27 = vsyncpa [#allocation4], 0
    %s28 = scalar_lea.sflag [#allocation4], 1
    %29 = vsyncpa %s28, 0
    loop: start=0, step=1, limit=4
    $region2: #{tpu_custom_call.1} parent=1 // loop_pre_header
      _
    $region3: #{tpu_custom_call.1} parent=1 // loop_header
      %s31 = sphi 0, %s35
      %p32 = scmp.ge.s32.totalorder %s31, 4
      %s41 = sphi 0, %s43
      %s44 = sphi 0, %s41
      %s45 = sphi 0, %s44
      %s61 = sphi 0, %s45
      %s67 = sphi 0, %s69
      %s70 = sphi 0, %s67
      %s71 = sphi 0, %s70
      %s87 = sphi 0, %s71
      %s91 = sphi 0, %s91
      %s93 = sphi 0, %s91
      %s94 = sphi 0, %s93
      %s108 = sphi 0, %s94
      %s112 = sphi 0, %s112
      %s114 = sphi 0, %s112
      %s115 = sphi 0, %s114
      %s129 = sphi 0, %s115
      %s133 = sphi 0, %s133
      %s135 = sphi 0, %s133
      %s136 = sphi 0, %s135
      %s150 = sphi 0, %s136
      %s154 = sphi 0, %s154
      %s156 = sphi 0, %s154
      %s157 = sphi 0, %s156
      %s171 = sphi 0, %s157
      %s175 = sphi 0, %s175
      %s177 = sphi 0, %s175
      %s178 = sphi 0, %s177
      %s192 = sphi 0, %s178
      %s196 = sphi 0, %s196
      %s198 = sphi 0, %s196
      %s199 = sphi 0, %s198
      %s213 = sphi 0, %s199
      %s217 = sphi 0, %s217
      %s219 = sphi 0, %s217
      %s220 = sphi 0, %s219
      %s234 = sphi 0, %s220
      %s238 = sphi 0, %s238
      %s240 = sphi 0, %s238
      %s241 = sphi 0, %s240
      %s255 = sphi 0, %s241
      %s259 = sphi 0, %s259
      %s261 = sphi 0, %s259
      %s262 = sphi 0, %s261
      %s276 = sphi 0, %s262
      %s280 = sphi 0, %s280
      %s282 = sphi 0, %s280
      %s283 = sphi 0, %s282
      %s297 = sphi 0, %s283
      %s303 = sphi 0, %s305
      %s306 = sphi 0, %s303
      %s307 = sphi 0, %s306
      %s323 = sphi 0, %s307
    $region4: #{tpu_custom_call.1} parent=1 // loop_header_branch
      %34 = sbr.rel (%p32) target = $region8
    $region5: #{tpu_custom_call.1} parent=1 // loop_body
      %s36 = ssub.s32 %s31, 1
      %s37 = ssub.s32 %s31, 2
      %s38 = sadd.s32 %s31, 1
      %s39 = ssub.s32 %s31, %s38
      %p40 = scmp.eq.s32.totalorder %s39, 0
      %s42 = sadd.s32 %s41, 1
      %s43 = scalar_select %p40, %s41, %s42
      %p46 = pneg %p40
      %p47 = scmp.eq.s32.totalorder %s31, 1
      %p48 = por %p46, %p47
      %p49 = scmp.ne.s32.totalorder %s41, %s44
      %p50 = scmp.eq.s32.totalorder %s31, 0
      %p51 = por %p49, %p50
      %p52 = scmp.ne.s32.totalorder %s41, %s44
      %p53 = scmp.eq.s32.totalorder %s36, 1
      %p54 = por %p52, %p53
      %p55 = scmp.ne.s32.totalorder %s44, %s45
      %p56 = scmp.eq.s32.totalorder %s36, 0
      %p57 = por %p55, %p56
      %p58 = scmp.ne.s32.totalorder %s44, %s45
      %p59 = scmp.eq.s32.totalorder %s37, 1
      %p60 = por %p58, %p59
      %p62 = scmp.ne.s32.totalorder %s45, %s61
      %p63 = scmp.eq.s32.totalorder %s37, 0
      %p64 = por %p62, %p63
      %s65 = ssub.s32 %s31, %s38
      %p66 = scmp.eq.s32.totalorder %s65, 0
      %s68 = sadd.s32 %s67, 1
      %s69 = scalar_select %p66, %s67, %s68
      %p72 = pneg %p66
      %p73 = scmp.eq.s32.totalorder %s31, 1
      %p74 = por %p72, %p73
      %p75 = scmp.ne.s32.totalorder %s67, %s70
      %p76 = scmp.eq.s32.totalorder %s31, 0
      %p77 = por %p75, %p76
      %p78 = scmp.ne.s32.totalorder %s67, %s70
      %p79 = scmp.eq.s32.totalorder %s36, 1
      %p80 = por %p78, %p79
      %p81 = scmp.ne.s32.totalorder %s70, %s71
      %p82 = scmp.eq.s32.totalorder %s36, 0
      %p83 = por %p81, %p82
      %p84 = scmp.ne.s32.totalorder %s70, %s71
      %p85 = scmp.eq.s32.totalorder %s37, 1
      %p86 = por %p84, %p85
      %p88 = scmp.ne.s32.totalorder %s71, %s87
      %p89 = scmp.eq.s32.totalorder %s37, 0
      %p90 = por %p88, %p89
      %s92 = sadd.s32 %s91, 1
      %p95 = scmp.eq.s32.totalorder %s31, 1
      %p96 = scmp.ne.s32.totalorder %s91, %s93
      %p97 = scmp.eq.s32.totalorder %s31, 0
      %p98 = por %p96, %p97
      %p99 = scmp.ne.s32.totalorder %s91, %s93
      %p100 = scmp.eq.s32.totalorder %s36, 1
      %p101 = por %p99, %p100
      %p102 = scmp.ne.s32.totalorder %s93, %s94
      %p103 = scmp.eq.s32.totalorder %s36, 0
      %p104 = por %p102, %p103
      %p105 = scmp.ne.s32.totalorder %s93, %s94
      %p106 = scmp.eq.s32.totalorder %s37, 1
      %p107 = por %p105, %p106
      %p109 = scmp.ne.s32.totalorder %s94, %s108
      %p110 = scmp.eq.s32.totalorder %s37, 0
      %p111 = por %p109, %p110
      %s113 = sadd.s32 %s112, 1
      %p116 = scmp.eq.s32.totalorder %s31, 1
      %p117 = scmp.ne.s32.totalorder %s112, %s114
      %p118 = scmp.eq.s32.totalorder %s31, 0
      %p119 = por %p117, %p118
      %p120 = scmp.ne.s32.totalorder %s112, %s114
      %p121 = scmp.eq.s32.totalorder %s36, 1
      %p122 = por %p120, %p121
      %p123 = scmp.ne.s32.totalorder %s114, %s115
      %p124 = scmp.eq.s32.totalorder %s36, 0
      %p125 = por %p123, %p124
      %p126 = scmp.ne.s32.totalorder %s114, %s115
      %p127 = scmp.eq.s32.totalorder %s37, 1
      %p128 = por %p126, %p127
      %p130 = scmp.ne.s32.totalorder %s115, %s129
      %p131 = scmp.eq.s32.totalorder %s37, 0
      %p132 = por %p130, %p131
      %s134 = sadd.s32 %s133, 1
      %p137 = scmp.eq.s32.totalorder %s31, 1
      %p138 = scmp.ne.s32.totalorder %s133, %s135
      %p139 = scmp.eq.s32.totalorder %s31, 0
      %p140 = por %p138, %p139
      %p141 = scmp.ne.s32.totalorder %s133, %s135
      %p142 = scmp.eq.s32.totalorder %s36, 1
      %p143 = por %p141, %p142
      %p144 = scmp.ne.s32.totalorder %s135, %s136
      %p145 = scmp.eq.s32.totalorder %s36, 0
      %p146 = por %p144, %p145
      %p147 = scmp.ne.s32.totalorder %s135, %s136
      %p148 = scmp.eq.s32.totalorder %s37, 1
      %p149 = por %p147, %p148
      %p151 = scmp.ne.s32.totalorder %s136, %s150
      %p152 = scmp.eq.s32.totalorder %s37, 0
      %p153 = por %p151, %p152
      %s155 = sadd.s32 %s154, 1
      %p158 = scmp.eq.s32.totalorder %s31, 1
      %p159 = scmp.ne.s32.totalorder %s154, %s156
      %p160 = scmp.eq.s32.totalorder %s31, 0
      %p161 = por %p159, %p160
      %p162 = scmp.ne.s32.totalorder %s154, %s156
      %p163 = scmp.eq.s32.totalorder %s36, 1
      %p164 = por %p162, %p163
      %p165 = scmp.ne.s32.totalorder %s156, %s157
      %p166 = scmp.eq.s32.totalorder %s36, 0
      %p167 = por %p165, %p166
      %p168 = scmp.ne.s32.totalorder %s156, %s157
      %p169 = scmp.eq.s32.totalorder %s37, 1
      %p170 = por %p168, %p169
      %p172 = scmp.ne.s32.totalorder %s157, %s171
      %p173 = scmp.eq.s32.totalorder %s37, 0
      %p174 = por %p172, %p173
      %s176 = sadd.s32 %s175, 1
      %p179 = scmp.eq.s32.totalorder %s31, 1
      %p180 = scmp.ne.s32.totalorder %s175, %s177
      %p181 = scmp.eq.s32.totalorder %s31, 0
      %p182 = por %p180, %p181
      %p183 = scmp.ne.s32.totalorder %s175, %s177
      %p184 = scmp.eq.s32.totalorder %s36, 1
      %p185 = por %p183, %p184
      %p186 = scmp.ne.s32.totalorder %s177, %s178
      %p187 = scmp.eq.s32.totalorder %s36, 0
      %p188 = por %p186, %p187
      %p189 = scmp.ne.s32.totalorder %s177, %s178
      %p190 = scmp.eq.s32.totalorder %s37, 1
      %p191 = por %p189, %p190
      %p193 = scmp.ne.s32.totalorder %s178, %s192
      %p194 = scmp.eq.s32.totalorder %s37, 0
      %p195 = por %p193, %p194
      %s197 = sadd.s32 %s196, 1
      %p200 = scmp.eq.s32.totalorder %s31, 1
      %p201 = scmp.ne.s32.totalorder %s196, %s198
      %p202 = scmp.eq.s32.totalorder %s31, 0
      %p203 = por %p201, %p202
      %p204 = scmp.ne.s32.totalorder %s196, %s198
      %p205 = scmp.eq.s32.totalorder %s36, 1
      %p206 = por %p204, %p205
      %p207 = scmp.ne.s32.totalorder %s198, %s199
      %p208 = scmp.eq.s32.totalorder %s36, 0
      %p209 = por %p207, %p208
      %p210 = scmp.ne.s32.totalorder %s198, %s199
      %p211 = scmp.eq.s32.totalorder %s37, 1
      %p212 = por %p210, %p211
      %p214 = scmp.ne.s32.totalorder %s199, %s213
      %p215 = scmp.eq.s32.totalorder %s37, 0
      %p216 = por %p214, %p215
      %s218 = sadd.s32 %s217, 1
      %p221 = scmp.eq.s32.totalorder %s31, 1
      %p222 = scmp.ne.s32.totalorder %s217, %s219
      %p223 = scmp.eq.s32.totalorder %s31, 0
      %p224 = por %p222, %p223
      %p225 = scmp.ne.s32.totalorder %s217, %s219
      %p226 = scmp.eq.s32.totalorder %s36, 1
      %p227 = por %p225, %p226
      %p228 = scmp.ne.s32.totalorder %s219, %s220
      %p229 = scmp.eq.s32.totalorder %s36, 0
      %p230 = por %p228, %p229
      %p231 = scmp.ne.s32.totalorder %s219, %s220
      %p232 = scmp.eq.s32.totalorder %s37, 1
      %p233 = por %p231, %p232
      %p235 = scmp.ne.s32.totalorder %s220, %s234
      %p236 = scmp.eq.s32.totalorder %s37, 0
      %p237 = por %p235, %p236
      %s239 = sadd.s32 %s238, 1
      %p242 = scmp.eq.s32.totalorder %s31, 1
      %p243 = scmp.ne.s32.totalorder %s238, %s240
      %p244 = scmp.eq.s32.totalorder %s31, 0
      %p245 = por %p243, %p244
      %p246 = scmp.ne.s32.totalorder %s238, %s240
      %p247 = scmp.eq.s32.totalorder %s36, 1
      %p248 = por %p246, %p247
      %p249 = scmp.ne.s32.totalorder %s240, %s241
      %p250 = scmp.eq.s32.totalorder %s36, 0
      %p251 = por %p249, %p250
      %p252 = scmp.ne.s32.totalorder %s240, %s241
      %p253 = scmp.eq.s32.totalorder %s37, 1
      %p254 = por %p252, %p253
      %p256 = scmp.ne.s32.totalorder %s241, %s255
      %p257 = scmp.eq.s32.totalorder %s37, 0
      %p258 = por %p256, %p257
      %s260 = sadd.s32 %s259, 1
      %p263 = scmp.eq.s32.totalorder %s31, 1
      %p264 = scmp.ne.s32.totalorder %s259, %s261
      %p265 = scmp.eq.s32.totalorder %s31, 0
      %p266 = por %p264, %p265
      %p267 = scmp.ne.s32.totalorder %s259, %s261
      %p268 = scmp.eq.s32.totalorder %s36, 1
      %p269 = por %p267, %p268
      %p270 = scmp.ne.s32.totalorder %s261, %s262
      %p271 = scmp.eq.s32.totalorder %s36, 0
      %p272 = por %p270, %p271
      %p273 = scmp.ne.s32.totalorder %s261, %s262
      %p274 = scmp.eq.s32.totalorder %s37, 1
      %p275 = por %p273, %p274
      %p277 = scmp.ne.s32.totalorder %s262, %s276
      %p278 = scmp.eq.s32.totalorder %s37, 0
      %p279 = por %p277, %p278
      %s281 = sadd.s32 %s280, 1
      %p284 = scmp.eq.s32.totalorder %s31, 1
      %p285 = scmp.ne.s32.totalorder %s280, %s282
      %p286 = scmp.eq.s32.totalorder %s31, 0
      %p287 = por %p285, %p286
      %p288 = scmp.ne.s32.totalorder %s280, %s282
      %p289 = scmp.eq.s32.totalorder %s36, 1
      %p290 = por %p288, %p289
      %p291 = scmp.ne.s32.totalorder %s282, %s283
      %p292 = scmp.eq.s32.totalorder %s36, 0
      %p293 = por %p291, %p292
      %p294 = scmp.ne.s32.totalorder %s282, %s283
      %p295 = scmp.eq.s32.totalorder %s37, 1
      %p296 = por %p294, %p295
      %p298 = scmp.ne.s32.totalorder %s283, %s297
      %p299 = scmp.eq.s32.totalorder %s37, 0
      %p300 = por %p298, %p299
      %s301 = ssub.s32 %s31, %s38
      %p302 = scmp.eq.s32.totalorder %s301, 0
      %s304 = sadd.s32 %s303, 1
      %s305 = scalar_select %p302, %s303, %s304
      %p308 = pneg %p302
      %p309 = scmp.eq.s32.totalorder %s31, 1
      %p310 = por %p308, %p309
      %p311 = scmp.ne.s32.totalorder %s303, %s306
      %p312 = scmp.eq.s32.totalorder %s31, 0
      %p313 = por %p311, %p312
      %p314 = scmp.ne.s32.totalorder %s303, %s306
      %p315 = scmp.eq.s32.totalorder %s36, 1
      %p316 = por %p314, %p315
      %p317 = scmp.ne.s32.totalorder %s306, %s307
      %p318 = scmp.eq.s32.totalorder %s36, 0
      %p319 = por %p317, %p318
      %p320 = scmp.ne.s32.totalorder %s306, %s307
      %p321 = scmp.eq.s32.totalorder %s37, 1
      %p322 = por %p320, %p321
      %p324 = scmp.ne.s32.totalorder %s307, %s323
      %p325 = scmp.eq.s32.totalorder %s37, 0
      %p326 = por %p324, %p325
      %p327 = scmp.le.s32.totalorder 1, %s31
      %p328 = scmp.lt.s32.totalorder %s31, 3
      %p329 = pnand %p327, %p328
      %p330 = pneg %p329
      // Predicated region
      $region9: #{tpu_custom_call.1} parent=5 // pred_check
        _
      $region10: #{tpu_custom_call.1} parent=5 // pred_check_branch
        %332 = sbr.rel (%p329) target = $region12
      $region11: #{tpu_custom_call.1} parent=5 // pred_region
        %s333 = ssub.s32 %s31, 1
        // Predicated region
        $region13: #{tpu_custom_call.1} parent=11 // pred_check
          %p334 = pneg %p104
        $region14: #{tpu_custom_call.1} parent=11 // pred_check_branch
          %336 = sbr.rel (%p334) target = $region16
        $region15: #{tpu_custom_call.1} parent=11 // pred_region
          %s338 = ssub.s32 128, 128
          %339 = vsyncadd [#allocation6], %s338
          %s341 = sshll.u32 [#allocation7], 4
          %s342 = int_to_ptr.vmem [resolvable:$true] %s341
          %344 = dma.hbm_to_vmem [thread:$0]  %s2, 128, %s342, [#allocation6]
        $region16: #{tpu_custom_call.1} parent=11 // pred_fallthru
          _
        // Predicated region
        $region17: #{tpu_custom_call.1} parent=11 // pred_check
          %p345 = pneg %p125
        $region18: #{tpu_custom_call.1} parent=11 // pred_check_branch
          %347 = sbr.rel (%p345) target = $region20
        $region19: #{tpu_custom_call.1} parent=11 // pred_region
          %s349 = ssub.s32 128, 128
          %350 = vsyncadd [#allocation9], %s349
          %s352 = sshll.u32 [#allocation8], 4
          %s353 = int_to_ptr.vmem [resolvable:$true] %s352
          %355 = dma.hbm_to_vmem [thread:$0]  %s3, 128, %s353, [#allocation9]
        $region20: #{tpu_custom_call.1} parent=11 // pred_fallthru
          _
        // Predicated region
        $region21: #{tpu_custom_call.1} parent=11 // pred_check
          %p356 = pneg %p146
        $region22: #{tpu_custom_call.1} parent=11 // pred_check_branch
          %358 = sbr.rel (%p356) target = $region24
        $region23: #{tpu_custom_call.1} parent=11 // pred_region
          %s360 = ssub.s32 4096, 4096
          %361 = vsyncadd [#allocation9], %s360
          %s362 = sshll.u32 [#allocation10], 4
          %s363 = int_to_ptr.vmem [resolvable:$true] %s362
          %368 = dma.hbm_to_vmem [thread:$0]  %s4, 4096, %s363, [#allocation9], 256, 256, 16
        $region24: #{tpu_custom_call.1} parent=11 // pred_fallthru
          _
        // Predicated region
        $region25: #{tpu_custom_call.1} parent=11 // pred_check
          %p369 = pneg %p167
        $region26: #{tpu_custom_call.1} parent=11 // pred_check_branch
          %371 = sbr.rel (%p369) target = $region28
        $region27: #{tpu_custom_call.1} parent=11 // pred_region
          %s373 = ssub.s32 4096, 4096
          %374 = vsyncadd [#allocation12], %s373
          %s375 = sshll.u32 [#allocation11], 4
          %s376 = int_to_ptr.vmem [resolvable:$true] %s375
          %381 = dma.hbm_to_vmem [thread:$0]  %s5, 4096, %s376, [#allocation12], 256, 256, 16
        $region28: #{tpu_custom_call.1} parent=11 // pred_fallthru
          _
        // Predicated region
        $region29: #{tpu_custom_call.1} parent=11 // pred_check
          %p382 = pneg %p188
        $region30: #{tpu_custom_call.1} parent=11 // pred_check_branch
          %384 = sbr.rel (%p382) target = $region32
        $region31: #{tpu_custom_call.1} parent=11 // pred_region
          _
        $region32: #{tpu_custom_call.1} parent=11 // pred_fallthru
          _
        // Predicated region
        $region33: #{tpu_custom_call.1} parent=11 // pred_check
          %p385 = pneg %p209
        $region34: #{tpu_custom_call.1} parent=11 // pred_check_branch
          %387 = sbr.rel (%p385) target = $region36
        $region35: #{tpu_custom_call.1} parent=11 // pred_region
          _
        $region36: #{tpu_custom_call.1} parent=11 // pred_fallthru
          _
        // Predicated region
        $region37: #{tpu_custom_call.1} parent=11 // pred_check
          %p388 = pneg %p230
        $region38: #{tpu_custom_call.1} parent=11 // pred_check_branch
          %390 = sbr.rel (%p388) target = $region40
        $region39: #{tpu_custom_call.1} parent=11 // pred_region
          %s392 = ssub.s32 2048, 2048
          %393 = vsyncadd [#allocation12], %s392
          %s394 = sshll.u32 [#allocation13], 4
          %s395 = int_to_ptr.vmem [resolvable:$true] %s394
          %400 = dma.hbm_to_vmem [thread:$0]  %s8, 2048, %s395, [#allocation12], 128, 128, 8
        $region40: #{tpu_custom_call.1} parent=11 // pred_fallthru
          _
        // Predicated region
        $region41: #{tpu_custom_call.1} parent=11 // pred_check
          %p401 = pneg %p251
        $region42: #{tpu_custom_call.1} parent=11 // pred_check_branch
          %403 = sbr.rel (%p401) target = $region44
        $region43: #{tpu_custom_call.1} parent=11 // pred_region
          %s405 = ssub.s32 6144, 6144
          %406 = vsyncadd [#allocation15], %s405
          %s407 = sshll.u32 [#allocation14], 4
          %s408 = int_to_ptr.vmem [resolvable:$true] %s407
          %413 = dma.hbm_to_vmem [thread:$0]  %s9, 6144, %s408, [#allocation15], 384, 384, 24
        $region44: #{tpu_custom_call.1} parent=11 // pred_fallthru
          _
        // Predicated region
        $region45: #{tpu_custom_call.1} parent=11 // pred_check
          %p414 = pneg %p272
        $region46: #{tpu_custom_call.1} parent=11 // pred_check_branch
          %416 = sbr.rel (%p414) target = $region48
        $region47: #{tpu_custom_call.1} parent=11 // pred_region
          %s418 = ssub.s32 4096, 4096
          %419 = vsyncadd [#allocation15], %s418
          %s420 = sshll.u32 [#allocation16], 4
          %s421 = int_to_ptr.vmem [resolvable:$true] %s420
          %426 = dma.hbm_to_vmem [thread:$0]  %s10, 4096, %s421, [#allocation15], 256, 256, 16
        $region48: #{tpu_custom_call.1} parent=11 // pred_fallthru
          _
        // Predicated region
        $region49: #{tpu_custom_call.1} parent=11 // pred_check
          %p427 = pneg %p293
        $region50: #{tpu_custom_call.1} parent=11 // pred_check_branch
          %429 = sbr.rel (%p427) target = $region52
        $region51: #{tpu_custom_call.1} parent=11 // pred_region
          %s431 = ssub.s32 2048, 2048
          %432 = vsyncadd [#allocation18], %s431
          %s433 = sshll.u32 [#allocation17], 4
          %s434 = int_to_ptr.vmem [resolvable:$true] %s433
          %439 = dma.hbm_to_vmem [thread:$0]  %s11, 2048, %s434, [#allocation18], 128, 128, 8
        $region52: #{tpu_custom_call.1} parent=11 // pred_fallthru
          _
      $region12: #{tpu_custom_call.1} parent=5 // pred_fallthru
        _
      %p440 = scmp.lt.s32.totalorder %s31, 2
      // Predicated region
      $region53: #{tpu_custom_call.1} parent=5 // pred_check
        %p441 = pneg %p440
      $region54: #{tpu_custom_call.1} parent=5 // pred_check_branch
        %443 = sbr.rel (%p441) target = $region56
      $region55: #{tpu_custom_call.1} parent=5 // pred_region
        // Predicated region
        $region57: #{tpu_custom_call.1} parent=55 // pred_check
          %p444 = pneg %p51
        $region58: #{tpu_custom_call.1} parent=55 // pred_check_branch
          %446 = sbr.rel (%p444) target = $region60
        $region59: #{tpu_custom_call.1} parent=55 // pred_region
          %s447 = sand.u32 %s41, 1
          %s448 = scalar_lea.sflag [#allocation3], %s447
          %s449 = sand.u32 %s41, 1
          %s450 = smul.addr %s449, 4
          %s451 = scalar_lea.vmem [#allocation2], %s450
          %s453 = ssub.s32 64, 64
          %454 = vsyncadd %s448, %s453
          %s455 = smul.addr %s31, 64
          %s456 = scalar_lea.hbm %s0, %s455
          %s458 = sshll.u32 %s451, 4
          %s459 = int_to_ptr.vmem [resolvable:$true] %s458
          %461 = dma.hbm_to_vmem [thread:$0]  %s456, 64, %s459, %s448
        $region60: #{tpu_custom_call.1} parent=55 // pred_fallthru
          _
        // Predicated region
        $region61: #{tpu_custom_call.1} parent=55 // pred_check
          %p462 = pneg %p77
        $region62: #{tpu_custom_call.1} parent=55 // pred_check_branch
          %464 = sbr.rel (%p462) target = $region64
        $region63: #{tpu_custom_call.1} parent=55 // pred_region
          %s465 = sand.u32 %s31, 1
          %s466 = scalar_lea.sflag [#allocation6], %s465
          %s467 = sand.u32 %s67, 1
          %s468 = smul.addr %s467, 4
          %s469 = scalar_lea.vmem [#allocation5], %s468
          %s471 = ssub.s32 64, 64
          %472 = vsyncadd %s466, %s471
          %s473 = smul.addr %s31, 64
          %s474 = scalar_lea.hbm %s1, %s473
          %s476 = sshll.u32 %s469, 4
          %s477 = int_to_ptr.vmem [resolvable:$true] %s476
          %479 = dma.hbm_to_vmem [thread:$0]  %s474, 64, %s477, %s466
        $region64: #{tpu_custom_call.1} parent=55 // pred_fallthru
          _
      $region56: #{tpu_custom_call.1} parent=5 // pred_fallthru
        _
      %p480 = scmp.le.s32.totalorder 1, %s31
      %p481 = scmp.lt.s32.totalorder %s31, 3
      %p482 = pnand %p480, %p481
      %p483 = pneg %p482
      // Predicated region
      $region65: #{tpu_custom_call.1} parent=5 // pred_check
        _
      $region66: #{tpu_custom_call.1} parent=5 // pred_check_branch
        %485 = sbr.rel (%p482) target = $region68
      $region67: #{tpu_custom_call.1} parent=5 // pred_region
        %s486 = ssub.s32 %s31, 1
        %s487 = sand.u32 %s44, 1
        %s488 = scalar_lea.sflag [#allocation3], %s487
        %s489 = sand.u32 %s44, 1
        %s490 = smul.addr %s489, 4
        %s491 = scalar_lea.vmem [#allocation2], %s490
        // Predicated region
        $region69: #{tpu_custom_call.1} parent=67 // pred_check
          %p492 = pneg %p57
        $region70: #{tpu_custom_call.1} parent=67 // pred_check_branch
          %494 = sbr.rel (%p492) target = $region72
        $region71: #{tpu_custom_call.1} parent=67 // pred_region
          %495 = dma.done %s488, 64
        $region72: #{tpu_custom_call.1} parent=67 // pred_fallthru
          _
        %s496 = sand.u32 %s36, 1
        %s497 = scalar_lea.sflag [#allocation6], %s496
        %s498 = sand.u32 %s70, 1
        %s499 = smul.addr %s498, 4
        %s500 = scalar_lea.vmem [#allocation5], %s499
        // Predicated region
        $region73: #{tpu_custom_call.1} parent=67 // pred_check
          %p501 = pneg %p83
        $region74: #{tpu_custom_call.1} parent=67 // pred_check_branch
          %503 = sbr.rel (%p501) target = $region76
        $region75: #{tpu_custom_call.1} parent=67 // pred_region
          %504 = dma.done %s497, 64
        $region76: #{tpu_custom_call.1} parent=67 // pred_fallthru
          _
        // Predicated region
        $region77: #{tpu_custom_call.1} parent=67 // pred_check
          %p505 = pneg %p104
        $region78: #{tpu_custom_call.1} parent=67 // pred_check_branch
          %507 = sbr.rel (%p505) target = $region80
        $region79: #{tpu_custom_call.1} parent=67 // pred_region
          %508 = dma.done [#allocation6], 128
        $region80: #{tpu_custom_call.1} parent=67 // pred_fallthru
          _
        // Predicated region
        $region81: #{tpu_custom_call.1} parent=67 // pred_check
          %p509 = pneg %p125
        $region82: #{tpu_custom_call.1} parent=67 // pred_check_branch
          %511 = sbr.rel (%p509) target = $region84
        $region83: #{tpu_custom_call.1} parent=67 // pred_region
          %512 = dma.done [#allocation9], 128
        $region84: #{tpu_custom_call.1} parent=67 // pred_fallthru
          _
        // Predicated region
        $region85: #{tpu_custom_call.1} parent=67 // pred_check
          %p513 = pneg %p146
        $region86: #{tpu_custom_call.1} parent=67 // pred_check_branch
          %515 = sbr.rel (%p513) target = $region88
        $region87: #{tpu_custom_call.1} parent=67 // pred_region
          %516 = dma.done [#allocation9], 4096
        $region88: #{tpu_custom_call.1} parent=67 // pred_fallthru
          _
        // Predicated region
        $region89: #{tpu_custom_call.1} parent=67 // pred_check
          %p517 = pneg %p167
        $region90: #{tpu_custom_call.1} parent=67 // pred_check_branch
          %519 = sbr.rel (%p517) target = $region92
        $region91: #{tpu_custom_call.1} parent=67 // pred_region
          %520 = dma.done [#allocation12], 4096
        $region92: #{tpu_custom_call.1} parent=67 // pred_fallthru
          _
        // Predicated region
        $region93: #{tpu_custom_call.1} parent=67 // pred_check
          %p521 = pneg %p230
        $region94: #{tpu_custom_call.1} parent=67 // pred_check_branch
          %523 = sbr.rel (%p521) target = $region96
        $region95: #{tpu_custom_call.1} parent=67 // pred_region
          %524 = dma.done [#allocation12], 2048
        $region96: #{tpu_custom_call.1} parent=67 // pred_fallthru
          _
        // Predicated region
        $region97: #{tpu_custom_call.1} parent=67 // pred_check
          %p525 = pneg %p251
        $region98: #{tpu_custom_call.1} parent=67 // pred_check_branch
          %527 = sbr.rel (%p525) target = $region100
        $region99: #{tpu_custom_call.1} parent=67 // pred_region
          %528 = dma.done [#allocation15], 6144
        $region100: #{tpu_custom_call.1} parent=67 // pred_fallthru
          _
        // Predicated region
        $region101: #{tpu_custom_call.1} parent=67 // pred_check
          %p529 = pneg %p272
        $region102: #{tpu_custom_call.1} parent=67 // pred_check_branch
          %531 = sbr.rel (%p529) target = $region104
        $region103: #{tpu_custom_call.1} parent=67 // pred_region
          %532 = dma.done [#allocation15], 4096
        $region104: #{tpu_custom_call.1} parent=67 // pred_fallthru
          _
        // Predicated region
        $region105: #{tpu_custom_call.1} parent=67 // pred_check
          %p533 = pneg %p293
        $region106: #{tpu_custom_call.1} parent=67 // pred_check_branch
          %535 = sbr.rel (%p533) target = $region108
        $region107: #{tpu_custom_call.1} parent=67 // pred_region
          %536 = dma.done [#allocation18], 2048
        $region108: #{tpu_custom_call.1} parent=67 // pred_fallthru
          _
        %s537 = sand.u32 %s44, 1
        %s538 = scalar_lea.sflag [#allocation3], %s537
        %s539 = sand.u32 %s44, 1
        %s540 = smul.addr %s539, 4
        %s541 = scalar_lea.vmem [#allocation2], %s540
        %p542 = pneg %p57
        %p543 = pneg %p54
        %s544 = sand.u32 %s36, 1
        %s545 = scalar_lea.sflag [#allocation6], %s544
        %s546 = sand.u32 %s70, 1
        %s547 = smul.addr %s546, 4
        %s548 = scalar_lea.vmem [#allocation5], %s547
        %p549 = pneg %p83
        %p550 = pneg %p80
        %p551 = pneg %p104
        %p552 = pneg %p101
        %p553 = pneg %p125
        %p554 = pneg %p122
        %p555 = pneg %p146
        %p556 = pneg %p143
        %p557 = pneg %p167
        %p558 = pneg %p164
        %p559 = pneg %p188
        %p560 = pneg %p185
        %p561 = pneg %p209
        %p562 = pneg %p206
        %p563 = pneg %p230
        %p564 = pneg %p227
        %p565 = pneg %p251
        %p566 = pneg %p248
        %p567 = pneg %p272
        %p568 = pneg %p269
        %p569 = pneg %p293
        %p570 = pneg %p290
        %p571 = pneg %p319
        %p572 = pneg %p316
        %s573 = sand.u32 %s306, 1
        %s574 = scalar_lea.sflag [#allocation4], %s573
        %s575 = sand.u32 %s306, 1
        %s576 = smul.addr %s575, 8
        %s577 = scalar_lea.vmem [#allocation19], %s576
        %v578 = vld [vmem:[%s491] sm:$0xf]
        %v579 = vunpack.c.l.bf16 %v578
        %v580 = vld [vmem:[%s500] sm:$0xf]
        %v581 = vunpack.c.l.bf16 %v580
        %v582 = vmax.f32 %v579, 0.0
        %v583 = vmin.f32 %v582, 1.0
        %v584 = vsub.f32 0.0, %v579
        %v585 = vmax.f32 %v584, 0.0
        %v586 = vmin.f32 %v585, 1.0
        %v587 = vmax.f32 %v581, 0.0
        %v588 = vmin.f32 %v587, 1.0
        %v589 = vsub.f32 0.0, %v581
        %v590 = vmax.f32 %v589, 0.0
        %v591 = vmin.f32 %v590, 1.0
        %v592 = vld [vmem:[%s6] sm:$0x1]
        %v594 = vlaneseq
        %v595 = vshrl.u32 %v594, 7
        %v596 = vsub.s32 0, %v595
        %v597 = vrot.slane %v592, %v596
        %v599 = vld [vmem:[%s7] sm:$0x1]
        %v601 = vlaneseq
        %v602 = vshrl.u32 %v601, 7
        %v603 = vsub.s32 0, %v602
        %v604 = vrot.slane %v599, %v603
        %v606 = vld [vmem:[#allocation7] sm:$0xff]
        %v607 = vld [vmem:[#allocation10] sm:$0xff]
        %v608 = vld [vmem:[#allocation10 + $0x8] sm:$0xff]
        %v609 = vld [vmem:[#allocation10 + $0x10] sm:$0xff]
        %v610 = vld [vmem:[#allocation10 + $0x18] sm:$0xff]
        %v611 = vld [vmem:[#allocation10 + $0x20] sm:$0xff]
        %v612 = vld [vmem:[#allocation10 + $0x28] sm:$0xff]
        %v613 = vld [vmem:[#allocation10 + $0x30] sm:$0xff]
        %v614 = vld [vmem:[#allocation10 + $0x38] sm:$0xff]
        %v615 = vld [vmem:[#allocation10 + $0x40] sm:$0xff]
        %v616 = vld [vmem:[#allocation10 + $0x48] sm:$0xff]
        %v617 = vld [vmem:[#allocation10 + $0x50] sm:$0xff]
        %v618 = vld [vmem:[#allocation10 + $0x58] sm:$0xff]
        %v619 = vld [vmem:[#allocation10 + $0x60] sm:$0xff]
        %v620 = vld [vmem:[#allocation10 + $0x68] sm:$0xff]
        %v621 = vld [vmem:[#allocation10 + $0x70] sm:$0xff]
        %v622 = vld [vmem:[#allocation10 + $0x78] sm:$0xff]
        %v623 = vld [vmem:[#allocation10 + $0x80] sm:$0xff]
        %v624 = vld [vmem:[#allocation10 + $0x88] sm:$0xff]
        %v625 = vld [vmem:[#allocation10 + $0x90] sm:$0xff]
        %v626 = vld [vmem:[#allocation10 + $0x98] sm:$0xff]
        %v627 = vld [vmem:[#allocation10 + $0xa0] sm:$0xff]
        %v628 = vld [vmem:[#allocation10 + $0xa8] sm:$0xff]
        %v629 = vld [vmem:[#allocation10 + $0xb0] sm:$0xff]
        %v630 = vld [vmem:[#allocation10 + $0xb8] sm:$0xff]
        %v631 = vld [vmem:[#allocation10 + $0xc0] sm:$0xff]
        %v632 = vld [vmem:[#allocation10 + $0xc8] sm:$0xff]
        %v633 = vld [vmem:[#allocation10 + $0xd0] sm:$0xff]
        %v634 = vld [vmem:[#allocation10 + $0xd8] sm:$0xff]
        %v635 = vld [vmem:[#allocation10 + $0xe0] sm:$0xff]
        %v636 = vld [vmem:[#allocation10 + $0xe8] sm:$0xff]
        %v637 = vld [vmem:[#allocation10 + $0xf0] sm:$0xff]
        %v638 = vld [vmem:[#allocation10 + $0xf8] sm:$0xff]
        %639 = vmatprep.subr.mxu0 %v638
        %640 = vmatpush1.msra.mxu0 %v637
        %641 = vmatprep.subr.mxu0 %v636
        %642 = vmatpush1.msra.mxu0 %v635
        %643 = vmatprep.subr.mxu0 %v634
        %644 = vmatpush1.msra.mxu0 %v633
        %645 = vmatprep.subr.mxu0 %v632
        %646 = vmatpush1.msra.mxu0 %v631
        %647 = vmatprep.subr.mxu0 %v630
        %648 = vmatpush1.msra.mxu0 %v629
        %649 = vmatprep.subr.mxu0 %v628
        %650 = vmatpush1.msra.mxu0 %v627
        %651 = vmatprep.subr.mxu0 %v626
        %652 = vmatpush1.msra.mxu0 %v625
        %653 = vmatprep.subr.mxu0 %v624
        %654 = vmatpush1.msra.mxu0 %v623
        %655 = vmatprep.subr.mxu0 %v622
        %656 = vmatpush1.msra.mxu0 %v621
        %657 = vmatprep.subr.mxu0 %v620
        %658 = vmatpush1.msra.mxu0 %v619
        %659 = vmatprep.subr.mxu0 %v618
        %660 = vmatpush1.msra.mxu0 %v617
        %661 = vmatprep.subr.mxu0 %v616
        %662 = vmatpush1.msra.mxu0 %v615
        %663 = vmatprep.subr.mxu0 %v614
        %664 = vmatpush1.msra.mxu0 %v613
        %665 = vmatprep.subr.mxu0 %v612
        %666 = vmatpush1.msra.mxu0 %v611
        %667 = vmatprep.subr.mxu0 %v610
        %668 = vmatpush1.msra.mxu0 %v609
        %669 = vmatprep.subr.mxu0 %v608
        %670 = vmatpush1.msra.mxu0 %v607
        %671 = vmatprep.subr.mxu0 0.0
        %672 = vmatpush2.msra.mxu0 0.0
        %673 = vmatprep.subr.mxu0 0.0
        %674 = vmatpush2.msra.mxu0 0.0
        %675 = vmatprep.subr.mxu0 0.0
        %676 = vmatpush2.msra.mxu0 0.0
        %677 = vmatprep.subr.mxu0 0.0
        %678 = vmatpush2.msra.mxu0 0.0
        %679 = vmatprep.subr.mxu0 0.0
        %680 = vmatpush2.msra.mxu0 0.0
        %681 = vmatprep.subr.mxu0 0.0
        %682 = vmatpush2.msra.mxu0 0.0
        %683 = vmatprep.subr.mxu0 0.0
        %684 = vmatpush2.msra.mxu0 0.0
        %685 = vmatprep.subr.mxu0 0.0
        %686 = vmatpush2.msra.mxu0 0.0
        %687 = vmatprep.subr.mxu0 0.0
        %688 = vmatpush2.msra.mxu0 0.0
        %689 = vmatprep.subr.mxu0 0.0
        %690 = vmatpush2.msra.mxu0 0.0
        %691 = vmatprep.subr.mxu0 0.0
        %692 = vmatpush2.msra.mxu0 0.0
        %693 = vmatprep.subr.mxu0 0.0
        %694 = vmatpush2.msra.mxu0 0.0
        %695 = vmatprep.subr.mxu0 0.0
        %696 = vmatpush2.msra.mxu0 0.0
        %697 = vmatprep.subr.mxu0 0.0
        %698 = vmatpush2.msra.mxu0 0.0
        %699 = vmatprep.subr.mxu0 0.0
        %700 = vmatpush2.msra.mxu0 0.0
        %701 = vmatprep.subr.mxu0 0.0
        %702 = vmatpush2.msra.mxu0 0.0
        %703 = vmatprep.mubr.f32.mxu0 0.0
        %704 = vmatmul.mubr.f32.gmra.mxu0 %v606
        %v705 = vpop.f32.mrf.mxu0
        %v706 = vadd.f32 0.0, %v705
        %v707 = vpop.f32.mrf.mxu0
        %v708 = vadd.f32 0.0, %v707
        %709 = vdwg.mxu0
        %vm710 = vcmask 64512
        %v712 = vsel %vm710, %v591, 0
        %714 = vmatprep.subr.mxu0 0.0
        %715 = vmatpush1.msra.mxu0 0.0
        %716 = vmatprep.subr.mxu0 0.0
        %717 = vmatpush1.msra.mxu0 0.0
        %718 = vmatprep.subr.mxu0 0.0
        %719 = vmatpush1.msra.mxu0 0.0
        %720 = vmatprep.subr.mxu0 0.0
        %721 = vmatpush1.msra.mxu0 0.0
        %722 = vmatprep.subr.mxu0 0.0
        %723 = vmatpush1.msra.mxu0 0.0
        %724 = vmatprep.subr.mxu0 0.0
        %725 = vmatpush1.msra.mxu0 0.0
        %726 = vmatprep.subr.mxu0 0.0
        %727 = vmatpush1.msra.mxu0 0.0
        %728 = vmatprep.subr.mxu0 0.0
        %729 = vmatpush1.msra.mxu0 0.0
        %730 = vmatprep.subr.mxu0 0.0
        %731 = vmatpush1.msra.mxu0 0.0
        %732 = vmatprep.subr.mxu0 0.0
        %733 = vmatpush1.msra.mxu0 0.0
        %734 = vmatprep.subr.mxu0 0.0
        %735 = vmatpush1.msra.mxu0 0.0
        %736 = vmatprep.subr.mxu0 0.0
        %737 = vmatpush1.msra.mxu0 0.0
        %738 = vmatprep.subr.mxu0 0.0
        %739 = vmatpush1.msra.mxu0 0.0
        %740 = vmatprep.subr.mxu0 0.0
        %741 = vmatpush1.msra.mxu0 0.0
        %742 = vmatprep.subr.mxu0 0.0
        %743 = vmatpush1.msra.mxu0 0.0
        %744 = vmatprep.subr.mxu0 0.0
        %745 = vmatpush1.msra.mxu0 %v708
        %746 = vmatprep.subr.mxu0 0.0
        %747 = vmatpush2.msra.mxu0 0.0
        %748 = vmatprep.subr.mxu0 0.0
        %749 = vmatpush2.msra.mxu0 0.0
        %750 = vmatprep.subr.mxu0 0.0
        %751 = vmatpush2.msra.mxu0 0.0
        %752 = vmatprep.subr.mxu0 0.0
        %753 = vmatpush2.msra.mxu0 0.0
        %754 = vmatprep.subr.mxu0 0.0
        %755 = vmatpush2.msra.mxu0 0.0
        %756 = vmatprep.subr.mxu0 0.0
        %757 = vmatpush2.msra.mxu0 0.0
        %758 = vmatprep.subr.mxu0 0.0
        %759 = vmatpush2.msra.mxu0 0.0
        %760 = vmatprep.subr.mxu0 0.0
        %761 = vmatpush2.msra.mxu0 0.0
        %762 = vmatprep.subr.mxu0 0.0
        %763 = vmatpush2.msra.mxu0 0.0
        %764 = vmatprep.subr.mxu0 0.0
        %765 = vmatpush2.msra.mxu0 0.0
        %766 = vmatprep.subr.mxu0 0.0
        %767 = vmatpush2.msra.mxu0 0.0
        %768 = vmatprep.subr.mxu0 0.0
        %769 = vmatpush2.msra.mxu0 0.0
        %770 = vmatprep.subr.mxu0 0.0
        %771 = vmatpush2.msra.mxu0 0.0
        %772 = vmatprep.subr.mxu0 0.0
        %773 = vmatpush2.msra.mxu0 0.0
        %774 = vmatprep.subr.mxu0 0.0
        %775 = vmatpush2.msra.mxu0 0.0
        %776 = vmatprep.subr.mxu0 0.0
        %777 = vmatpush2.msra.mxu0 0.0
        %778 = vmatprep.mubr.f32.mxu0 0.0
        %779 = vmatmul.mubr.f32.gmra.mxu0 %v712
        %v780 = vpop.f32.mrf.mxu0
        %v781 = vadd.f32 0.0, %v780
        %v782 = vpop.f32.mrf.mxu0
        %783 = vdwg.mxu0
        %v785 = vsel %vm710, %v588, 0
        %787 = vmatprep.subr.mxu0 0.0
        %788 = vmatpush1.msra.mxu0 0.0
        %789 = vmatprep.subr.mxu0 0.0
        %790 = vmatpush1.msra.mxu0 0.0
        %791 = vmatprep.subr.mxu0 0.0
        %792 = vmatpush1.msra.mxu0 0.0
        %793 = vmatprep.subr.mxu0 0.0
        %794 = vmatpush1.msra.mxu0 0.0
        %795 = vmatprep.subr.mxu0 0.0
        %796 = vmatpush1.msra.mxu0 0.0
        %797 = vmatprep.subr.mxu0 0.0
        %798 = vmatpush1.msra.mxu0 0.0
        %799 = vmatprep.subr.mxu0 0.0
        %800 = vmatpush1.msra.mxu0 0.0
        %801 = vmatprep.subr.mxu0 0.0
        %802 = vmatpush1.msra.mxu0 0.0
        %803 = vmatprep.subr.mxu0 0.0
        %804 = vmatpush1.msra.mxu0 0.0
        %805 = vmatprep.subr.mxu0 0.0
        %806 = vmatpush1.msra.mxu0 0.0
        %807 = vmatprep.subr.mxu0 0.0
        %808 = vmatpush1.msra.mxu0 0.0
        %809 = vmatprep.subr.mxu0 0.0
        %810 = vmatpush1.msra.mxu0 0.0
        %811 = vmatprep.subr.mxu0 0.0
        %812 = vmatpush1.msra.mxu0 0.0
        %813 = vmatprep.subr.mxu0 0.0
        %814 = vmatpush1.msra.mxu0 0.0
        %815 = vmatprep.subr.mxu0 0.0
        %816 = vmatpush1.msra.mxu0 0.0
        %817 = vmatprep.subr.mxu0 0.0
        %818 = vmatpush1.msra.mxu0 %v706
        %819 = vmatprep.subr.mxu0 0.0
        %820 = vmatpush2.msra.mxu0 0.0
        %821 = vmatprep.subr.mxu0 0.0
        %822 = vmatpush2.msra.mxu0 0.0
        %823 = vmatprep.subr.mxu0 0.0
        %824 = vmatpush2.msra.mxu0 0.0
        %825 = vmatprep.subr.mxu0 0.0
        %826 = vmatpush2.msra.mxu0 0.0
        %827 = vmatprep.subr.mxu0 0.0
        %828 = vmatpush2.msra.mxu0 0.0
        %829 = vmatprep.subr.mxu0 0.0
        %830 = vmatpush2.msra.mxu0 0.0
        %831 = vmatprep.subr.mxu0 0.0
        %832 = vmatpush2.msra.mxu0 0.0
        %833 = vmatprep.subr.mxu0 0.0
        %834 = vmatpush2.msra.mxu0 0.0
        %835 = vmatprep.subr.mxu0 0.0
        %836 = vmatpush2.msra.mxu0 0.0
        %837 = vmatprep.subr.mxu0 0.0
        %838 = vmatpush2.msra.mxu0 0.0
        %839 = vmatprep.subr.mxu0 0.0
        %840 = vmatpush2.msra.mxu0 0.0
        %841 = vmatprep.subr.mxu0 0.0
        %842 = vmatpush2.msra.mxu0 0.0
        %843 = vmatprep.subr.mxu0 0.0
        %844 = vmatpush2.msra.mxu0 0.0
        %845 = vmatprep.subr.mxu0 0.0
        %846 = vmatpush2.msra.mxu0 0.0
        %847 = vmatprep.subr.mxu0 0.0
        %848 = vmatpush2.msra.mxu0 0.0
        %849 = vmatprep.subr.mxu0 0.0
        %850 = vmatpush2.msra.mxu0 0.0
        %851 = vmatprep.mubr.f32.mxu0 0.0
        %852 = vmatmul.mubr.f32.gmra.mxu0 %v785
        %v853 = vpop.f32.mrf.mxu0
        %v854 = vadd.f32 %v781, %v853
        %v855 = vpop.f32.mrf.mxu0
        %856 = vdwg.mxu0
        %v857 = vadd.f32 %v854, %v597
        %v858 = vtanh.pop %v857
        %v859 = vld [vmem:[#allocation11] sm:$0xff]
        %v860 = vld [vmem:[#allocation11 + $0x8] sm:$0xff]
        %v861 = vld [vmem:[#allocation11 + $0x10] sm:$0xff]
        %v862 = vld [vmem:[#allocation11 + $0x18] sm:$0xff]
        %v863 = vld [vmem:[#allocation11 + $0x20] sm:$0xff]
        %v864 = vld [vmem:[#allocation11 + $0x28] sm:$0xff]
        %v865 = vld [vmem:[#allocation11 + $0x30] sm:$0xff]
        %v866 = vld [vmem:[#allocation11 + $0x38] sm:$0xff]
        %v867 = vld [vmem:[#allocation11 + $0x40] sm:$0xff]
        %v868 = vld [vmem:[#allocation11 + $0x48] sm:$0xff]
        %v869 = vld [vmem:[#allocation11 + $0x50] sm:$0xff]
        %v870 = vld [vmem:[#allocation11 + $0x58] sm:$0xff]
        %v871 = vld [vmem:[#allocation11 + $0x60] sm:$0xff]
        %v872 = vld [vmem:[#allocation11 + $0x68] sm:$0xff]
        %v873 = vld [vmem:[#allocation11 + $0x70] sm:$0xff]
        %v874 = vld [vmem:[#allocation11 + $0x78] sm:$0xff]
        %v875 = vld [vmem:[#allocation11 + $0x80] sm:$0xff]
        %v876 = vld [vmem:[#allocation11 + $0x88] sm:$0xff]
        %v877 = vld [vmem:[#allocation11 + $0x90] sm:$0xff]
        %v878 = vld [vmem:[#allocation11 + $0x98] sm:$0xff]
        %v879 = vld [vmem:[#allocation11 + $0xa0] sm:$0xff]
        %v880 = vld [vmem:[#allocation11 + $0xa8] sm:$0xff]
        %v881 = vld [vmem:[#allocation11 + $0xb0] sm:$0xff]
        %v882 = vld [vmem:[#allocation11 + $0xb8] sm:$0xff]
        %v883 = vld [vmem:[#allocation11 + $0xc0] sm:$0xff]
        %v884 = vld [vmem:[#allocation11 + $0xc8] sm:$0xff]
        %v885 = vld [vmem:[#allocation11 + $0xd0] sm:$0xff]
        %v886 = vld [vmem:[#allocation11 + $0xd8] sm:$0xff]
        %v887 = vld [vmem:[#allocation11 + $0xe0] sm:$0xff]
        %v888 = vld [vmem:[#allocation11 + $0xe8] sm:$0xff]
        %v889 = vld [vmem:[#allocation11 + $0xf0] sm:$0xff]
        %v890 = vld [vmem:[#allocation11 + $0xf8] sm:$0xff]
        %891 = vmatprep.subr.mxu0 %v890
        %892 = vmatpush1.msra.mxu0 %v889
        %893 = vmatprep.subr.mxu0 %v888
        %894 = vmatpush1.msra.mxu0 %v887
        %895 = vmatprep.subr.mxu0 %v886
        %896 = vmatpush1.msra.mxu0 %v885
        %897 = vmatprep.subr.mxu0 %v884
        %898 = vmatpush1.msra.mxu0 %v883
        %899 = vmatprep.subr.mxu0 %v882
        %900 = vmatpush1.msra.mxu0 %v881
        %901 = vmatprep.subr.mxu0 %v880
        %902 = vmatpush1.msra.mxu0 %v879
        %903 = vmatprep.subr.mxu0 %v878
        %904 = vmatpush1.msra.mxu0 %v877
        %905 = vmatprep.subr.mxu0 %v876
        %906 = vmatpush1.msra.mxu0 %v875
        %907 = vmatprep.subr.mxu0 %v874
        %908 = vmatpush1.msra.mxu0 %v873
        %909 = vmatprep.subr.mxu0 %v872
        %910 = vmatpush1.msra.mxu0 %v871
        %911 = vmatprep.subr.mxu0 %v870
        %912 = vmatpush1.msra.mxu0 %v869
        %913 = vmatprep.subr.mxu0 %v868
        %914 = vmatpush1.msra.mxu0 %v867
        %915 = vmatprep.subr.mxu0 %v866
        %916 = vmatpush1.msra.mxu0 %v865
        %917 = vmatprep.subr.mxu0 %v864
        %918 = vmatpush1.msra.mxu0 %v863
        %919 = vmatprep.subr.mxu0 %v862
        %920 = vmatpush1.msra.mxu0 %v861
        %921 = vmatprep.subr.mxu0 %v860
        %922 = vmatpush1.msra.mxu0 %v859
        %923 = vmatprep.subr.mxu0 0.0
        %924 = vmatpush2.msra.mxu0 0.0
        %925 = vmatprep.subr.mxu0 0.0
        %926 = vmatpush2.msra.mxu0 0.0
        %927 = vmatprep.subr.mxu0 0.0
        %928 = vmatpush2.msra.mxu0 0.0
        %929 = vmatprep.subr.mxu0 0.0
        %930 = vmatpush2.msra.mxu0 0.0
        %931 = vmatprep.subr.mxu0 0.0
        %932 = vmatpush2.msra.mxu0 0.0
        %933 = vmatprep.subr.mxu0 0.0
        %934 = vmatpush2.msra.mxu0 0.0
        %935 = vmatprep.subr.mxu0 0.0
        %936 = vmatpush2.msra.mxu0 0.0
        %937 = vmatprep.subr.mxu0 0.0
        %938 = vmatpush2.msra.mxu0 0.0
        %939 = vmatprep.subr.mxu0 0.0
        %940 = vmatpush2.msra.mxu0 0.0
        %941 = vmatprep.subr.mxu0 0.0
        %942 = vmatpush2.msra.mxu0 0.0
        %943 = vmatprep.subr.mxu0 0.0
        %944 = vmatpush2.msra.mxu0 0.0
        %945 = vmatprep.subr.mxu0 0.0
        %946 = vmatpush2.msra.mxu0 0.0
        %947 = vmatprep.subr.mxu0 0.0
        %948 = vmatpush2.msra.mxu0 0.0
        %949 = vmatprep.subr.mxu0 0.0
        %950 = vmatpush2.msra.mxu0 0.0
        %951 = vmatprep.subr.mxu0 0.0
        %952 = vmatpush2.msra.mxu0 0.0
        %953 = vmatprep.subr.mxu0 0.0
        %954 = vmatpush2.msra.mxu0 0.0
        %955 = vmatprep.mubr.f32.mxu0 0.0
        %956 = vmatmul.mubr.f32.gmra.mxu0 %v858
        %v957 = vpop.f32.mrf.mxu0
        %v958 = vadd.f32 0.0, %v957
        %v959 = vpop.f32.mrf.mxu0
        %v960 = vadd.f32 0.0, %v959
        %961 = vdwg.mxu0
        %v963 = vsel %vm710, %v586, 0
        %965 = vmatprep.subr.mxu0 0.0
        %966 = vmatpush1.msra.mxu0 0.0
        %967 = vmatprep.subr.mxu0 0.0
        %968 = vmatpush1.msra.mxu0 0.0
        %969 = vmatprep.subr.mxu0 0.0
        %970 = vmatpush1.msra.mxu0 0.0
        %971 = vmatprep.subr.mxu0 0.0
        %972 = vmatpush1.msra.mxu0 0.0
        %973 = vmatprep.subr.mxu0 0.0
        %974 = vmatpush1.msra.mxu0 0.0
        %975 = vmatprep.subr.mxu0 0.0
        %976 = vmatpush1.msra.mxu0 0.0
        %977 = vmatprep.subr.mxu0 0.0
        %978 = vmatpush1.msra.mxu0 0.0
        %979 = vmatprep.subr.mxu0 0.0
        %980 = vmatpush1.msra.mxu0 0.0
        %981 = vmatprep.subr.mxu0 0.0
        %982 = vmatpush1.msra.mxu0 0.0
        %983 = vmatprep.subr.mxu0 0.0
        %984 = vmatpush1.msra.mxu0 0.0
        %985 = vmatprep.subr.mxu0 0.0
        %986 = vmatpush1.msra.mxu0 0.0
        %987 = vmatprep.subr.mxu0 0.0
        %988 = vmatpush1.msra.mxu0 0.0
        %989 = vmatprep.subr.mxu0 0.0
        %990 = vmatpush1.msra.mxu0 0.0
        %991 = vmatprep.subr.mxu0 0.0
        %992 = vmatpush1.msra.mxu0 0.0
        %993 = vmatprep.subr.mxu0 0.0
        %994 = vmatpush1.msra.mxu0 0.0
        %995 = vmatprep.subr.mxu0 0.0
        %996 = vmatpush1.msra.mxu0 %v960
        %997 = vmatprep.subr.mxu0 0.0
        %998 = vmatpush2.msra.mxu0 0.0
        %999 = vmatprep.subr.mxu0 0.0
        %1000 = vmatpush2.msra.mxu0 0.0
        %1001 = vmatprep.subr.mxu0 0.0
        %1002 = vmatpush2.msra.mxu0 0.0
        %1003 = vmatprep.subr.mxu0 0.0
        %1004 = vmatpush2.msra.mxu0 0.0
        %1005 = vmatprep.subr.mxu0 0.0
        %1006 = vmatpush2.msra.mxu0 0.0
        %1007 = vmatprep.subr.mxu0 0.0
        %1008 = vmatpush2.msra.mxu0 0.0
        %1009 = vmatprep.subr.mxu0 0.0
        %1010 = vmatpush2.msra.mxu0 0.0
        %1011 = vmatprep.subr.mxu0 0.0
        %1012 = vmatpush2.msra.mxu0 0.0
        %1013 = vmatprep.subr.mxu0 0.0
        %1014 = vmatpush2.msra.mxu0 0.0
        %1015 = vmatprep.subr.mxu0 0.0
        %1016 = vmatpush2.msra.mxu0 0.0
        %1017 = vmatprep.subr.mxu0 0.0
        %1018 = vmatpush2.msra.mxu0 0.0
        %1019 = vmatprep.subr.mxu0 0.0
        %1020 = vmatpush2.msra.mxu0 0.0
        %1021 = vmatprep.subr.mxu0 0.0
        %1022 = vmatpush2.msra.mxu0 0.0
        %1023 = vmatprep.subr.mxu0 0.0
        %1024 = vmatpush2.msra.mxu0 0.0
        %1025 = vmatprep.subr.mxu0 0.0
        %1026 = vmatpush2.msra.mxu0 0.0
        %1027 = vmatprep.subr.mxu0 0.0
        %1028 = vmatpush2.msra.mxu0 0.0
        %1029 = vmatprep.mubr.f32.mxu0 0.0
        %1030 = vmatmul.mubr.f32.gmra.mxu0 %v963
        %v1031 = vpop.f32.mrf.mxu0
        %v1032 = vadd.f32 0.0, %v1031
        %v1033 = vpop.f32.mrf.mxu0
        %1034 = vdwg.mxu0
        %v1036 = vsel %vm710, %v583, 0
        %1038 = vmatprep.subr.mxu0 0.0
        %1039 = vmatpush1.msra.mxu0 0.0
        %1040 = vmatprep.subr.mxu0 0.0
        %1041 = vmatpush1.msra.mxu0 0.0
        %1042 = vmatprep.subr.mxu0 0.0
        %1043 = vmatpush1.msra.mxu0 0.0
        %1044 = vmatprep.subr.mxu0 0.0
        %1045 = vmatpush1.msra.mxu0 0.0
        %1046 = vmatprep.subr.mxu0 0.0
        %1047 = vmatpush1.msra.mxu0 0.0
        %1048 = vmatprep.subr.mxu0 0.0
        %1049 = vmatpush1.msra.mxu0 0.0
        %1050 = vmatprep.subr.mxu0 0.0
        %1051 = vmatpush1.msra.mxu0 0.0
        %1052 = vmatprep.subr.mxu0 0.0
        %1053 = vmatpush1.msra.mxu0 0.0
        %1054 = vmatprep.subr.mxu0 0.0
        %1055 = vmatpush1.msra.mxu0 0.0
        %1056 = vmatprep.subr.mxu0 0.0
        %1057 = vmatpush1.msra.mxu0 0.0
        %1058 = vmatprep.subr.mxu0 0.0
        %1059 = vmatpush1.msra.mxu0 0.0
        %1060 = vmatprep.subr.mxu0 0.0
        %1061 = vmatpush1.msra.mxu0 0.0
        %1062 = vmatprep.subr.mxu0 0.0
        %1063 = vmatpush1.msra.mxu0 0.0
        %1064 = vmatprep.subr.mxu0 0.0
        %1065 = vmatpush1.msra.mxu0 0.0
        %1066 = vmatprep.subr.mxu0 0.0
        %1067 = vmatpush1.msra.mxu0 0.0
        %1068 = vmatprep.subr.mxu0 0.0
        %1069 = vmatpush1.msra.mxu0 %v958
        %1070 = vmatprep.subr.mxu0 0.0
        %1071 = vmatpush2.msra.mxu0 0.0
        %1072 = vmatprep.subr.mxu0 0.0
        %1073 = vmatpush2.msra.mxu0 0.0
        %1074 = vmatprep.subr.mxu0 0.0
        %1075 = vmatpush2.msra.mxu0 0.0
        %1076 = vmatprep.subr.mxu0 0.0
        %1077 = vmatpush2.msra.mxu0 0.0
        %1078 = vmatprep.subr.mxu0 0.0
        %1079 = vmatpush2.msra.mxu0 0.0
        %1080 = vmatprep.subr.mxu0 0.0
        %1081 = vmatpush2.msra.mxu0 0.0
        %1082 = vmatprep.subr.mxu0 0.0
        %1083 = vmatpush2.msra.mxu0 0.0
        %1084 = vmatprep.subr.mxu0 0.0
        %1085 = vmatpush2.msra.mxu0 0.0
        %1086 = vmatprep.subr.mxu0 0.0
        %1087 = vmatpush2.msra.mxu0 0.0
        %1088 = vmatprep.subr.mxu0 0.0
        %1089 = vmatpush2.msra.mxu0 0.0
        %1090 = vmatprep.subr.mxu0 0.0
        %1091 = vmatpush2.msra.mxu0 0.0
        %1092 = vmatprep.subr.mxu0 0.0
        %1093 = vmatpush2.msra.mxu0 0.0
        %1094 = vmatprep.subr.mxu0 0.0
        %1095 = vmatpush2.msra.mxu0 0.0
        %1096 = vmatprep.subr.mxu0 0.0
        %1097 = vmatpush2.msra.mxu0 0.0
        %1098 = vmatprep.subr.mxu0 0.0
        %1099 = vmatpush2.msra.mxu0 0.0
        %1100 = vmatprep.subr.mxu0 0.0
        %1101 = vmatpush2.msra.mxu0 0.0
        %1102 = vmatprep.mubr.f32.mxu0 0.0
        %1103 = vmatmul.mubr.f32.gmra.mxu0 %v1036
        %v1104 = vpop.f32.mrf.mxu0
        %v1105 = vadd.f32 %v1032, %v1104
        %v1106 = vpop.f32.mrf.mxu0
        %1107 = vdwg.mxu0
        %v1108 = vadd.f32 %v1105, %v604
        %v1109 = vtanh.pop %v1108
        %v1110 = vld [vmem:[#allocation8] sm:$0xff]
        %v1111 = vld [vmem:[#allocation13] sm:$0xff]
        %v1112 = vld [vmem:[#allocation13 + $0x8] sm:$0xff]
        %v1113 = vld [vmem:[#allocation13 + $0x10] sm:$0xff]
        %v1114 = vld [vmem:[#allocation13 + $0x18] sm:$0xff]
        %v1115 = vld [vmem:[#allocation13 + $0x20] sm:$0xff]
        %v1116 = vld [vmem:[#allocation13 + $0x28] sm:$0xff]
        %v1117 = vld [vmem:[#allocation13 + $0x30] sm:$0xff]
        %v1118 = vld [vmem:[#allocation13 + $0x38] sm:$0xff]
        %v1119 = vld [vmem:[#allocation13 + $0x40] sm:$0xff]
        %v1120 = vld [vmem:[#allocation13 + $0x48] sm:$0xff]
        %v1121 = vld [vmem:[#allocation13 + $0x50] sm:$0xff]
        %v1122 = vld [vmem:[#allocation13 + $0x58] sm:$0xff]
        %v1123 = vld [vmem:[#allocation13 + $0x60] sm:$0xff]
        %v1124 = vld [vmem:[#allocation13 + $0x68] sm:$0xff]
        %v1125 = vld [vmem:[#allocation13 + $0x70] sm:$0xff]
        %v1126 = vld [vmem:[#allocation13 + $0x78] sm:$0xff]
        %1127 = vmatprep.subr.mxu0 0.0
        %1128 = vmatpush1.msra.mxu0 %v1126
        %1129 = vmatprep.subr.mxu0 0.0
        %1130 = vmatpush1.msra.mxu0 %v1125
        %1131 = vmatprep.subr.mxu0 0.0
        %1132 = vmatpush1.msra.mxu0 %v1124
        %1133 = vmatprep.subr.mxu0 0.0
        %1134 = vmatpush1.msra.mxu0 %v1123
        %1135 = vmatprep.subr.mxu0 0.0
        %1136 = vmatpush1.msra.mxu0 %v1122
        %1137 = vmatprep.subr.mxu0 0.0
        %1138 = vmatpush1.msra.mxu0 %v1121
        %1139 = vmatprep.subr.mxu0 0.0
        %1140 = vmatpush1.msra.mxu0 %v1120
        %1141 = vmatprep.subr.mxu0 0.0
        %1142 = vmatpush1.msra.mxu0 %v1119
        %1143 = vmatprep.subr.mxu0 0.0
        %1144 = vmatpush1.msra.mxu0 %v1118
        %1145 = vmatprep.subr.mxu0 0.0
        %1146 = vmatpush1.msra.mxu0 %v1117
        %1147 = vmatprep.subr.mxu0 0.0
        %1148 = vmatpush1.msra.mxu0 %v1116
        %1149 = vmatprep.subr.mxu0 0.0
        %1150 = vmatpush1.msra.mxu0 %v1115
        %1151 = vmatprep.subr.mxu0 0.0
        %1152 = vmatpush1.msra.mxu0 %v1114
        %1153 = vmatprep.subr.mxu0 0.0
        %1154 = vmatpush1.msra.mxu0 %v1113
        %1155 = vmatprep.subr.mxu0 0.0
        %1156 = vmatpush1.msra.mxu0 %v1112
        %1157 = vmatprep.subr.mxu0 0.0
        %1158 = vmatpush1.msra.mxu0 %v1111
        %1159 = vmatprep.subr.mxu0 0.0
        %1160 = vmatpush2.msra.mxu0 0.0
        %1161 = vmatprep.subr.mxu0 0.0
        %1162 = vmatpush2.msra.mxu0 0.0
        %1163 = vmatprep.subr.mxu0 0.0
        %1164 = vmatpush2.msra.mxu0 0.0
        %1165 = vmatprep.subr.mxu0 0.0
        %1166 = vmatpush2.msra.mxu0 0.0
        %1167 = vmatprep.subr.mxu0 0.0
        %1168 = vmatpush2.msra.mxu0 0.0
        %1169 = vmatprep.subr.mxu0 0.0
        %1170 = vmatpush2.msra.mxu0 0.0
        %1171 = vmatprep.subr.mxu0 0.0
        %1172 = vmatpush2.msra.mxu0 0.0
        %1173 = vmatprep.subr.mxu0 0.0
        %1174 = vmatpush2.msra.mxu0 0.0
        %1175 = vmatprep.subr.mxu0 0.0
        %1176 = vmatpush2.msra.mxu0 0.0
        %1177 = vmatprep.subr.mxu0 0.0
        %1178 = vmatpush2.msra.mxu0 0.0
        %1179 = vmatprep.subr.mxu0 0.0
        %1180 = vmatpush2.msra.mxu0 0.0
        %1181 = vmatprep.subr.mxu0 0.0
        %1182 = vmatpush2.msra.mxu0 0.0
        %1183 = vmatprep.subr.mxu0 0.0
        %1184 = vmatpush2.msra.mxu0 0.0
        %1185 = vmatprep.subr.mxu0 0.0
        %1186 = vmatpush2.msra.mxu0 0.0
        %1187 = vmatprep.subr.mxu0 0.0
        %1188 = vmatpush2.msra.mxu0 0.0
        %1189 = vmatprep.subr.mxu0 0.0
        %1190 = vmatpush2.msra.mxu0 0.0
        %1191 = vmatprep.mubr.f32.mxu0 0.0
        %1192 = vmatmul.mubr.f32.gmra.mxu0 %v1109
        %v1193 = vpop.f32.mrf.mxu0
        %v1194 = vadd.f32 0.0, %v1193
        %v1195 = vpop.f32.mrf.mxu0
        %1196 = vdwg.mxu0
        %v1197 = vadd.f32 %v1110, %v1194
        %v1198 = vtanh.pop %v1197
        %v1199 = vld [vmem:[#allocation14] sm:$0xff]
        %v1200 = vld [vmem:[#allocation14 + $0x8] sm:$0xff]
        %v1201 = vld [vmem:[#allocation14 + $0x10] sm:$0xff]
        %v1202 = vld [vmem:[#allocation14 + $0x18] sm:$0xff]
        %v1203 = vld [vmem:[#allocation14 + $0x20] sm:$0xff]
        %v1204 = vld [vmem:[#allocation14 + $0x28] sm:$0xff]
        %v1205 = vld [vmem:[#allocation14 + $0x30] sm:$0xff]
        %v1206 = vld [vmem:[#allocation14 + $0x38] sm:$0xff]
        %v1207 = vld [vmem:[#allocation14 + $0x40] sm:$0xff]
        %v1208 = vld [vmem:[#allocation14 + $0x48] sm:$0xff]
        %v1209 = vld [vmem:[#allocation14 + $0x50] sm:$0xff]
        %v1210 = vld [vmem:[#allocation14 + $0x58] sm:$0xff]
        %v1211 = vld [vmem:[#allocation14 + $0x60] sm:$0xff]
        %v1212 = vld [vmem:[#allocation14 + $0x68] sm:$0xff]
        %v1213 = vld [vmem:[#allocation14 + $0x70] sm:$0xff]
        %v1214 = vld [vmem:[#allocation14 + $0x78] sm:$0xff]
        %v1215 = vld [vmem:[#allocation14 + $0x80] sm:$0xff]
        %v1216 = vld [vmem:[#allocation14 + $0x88] sm:$0xff]
        %v1217 = vld [vmem:[#allocation14 + $0x90] sm:$0xff]
        %v1218 = vld [vmem:[#allocation14 + $0x98] sm:$0xff]
        %v1219 = vld [vmem:[#allocation14 + $0xa0] sm:$0xff]
        %v1220 = vld [vmem:[#allocation14 + $0xa8] sm:$0xff]
        %v1221 = vld [vmem:[#allocation14 + $0xb0] sm:$0xff]
        %v1222 = vld [vmem:[#allocation14 + $0xb8] sm:$0xff]
        %v1223 = vld [vmem:[#allocation14 + $0xc0] sm:$0xff]
        %v1224 = vld [vmem:[#allocation14 + $0xc8] sm:$0xff]
        %v1225 = vld [vmem:[#allocation14 + $0xd0] sm:$0xff]
        %v1226 = vld [vmem:[#allocation14 + $0xd8] sm:$0xff]
        %v1227 = vld [vmem:[#allocation14 + $0xe0] sm:$0xff]
        %v1228 = vld [vmem:[#allocation14 + $0xe8] sm:$0xff]
        %v1229 = vld [vmem:[#allocation14 + $0xf0] sm:$0xff]
        %v1230 = vld [vmem:[#allocation14 + $0xf8] sm:$0xff]
        %v1231 = vld [vmem:[#allocation14 + $0x100] sm:$0xff]
        %v1232 = vld [vmem:[#allocation14 + $0x108] sm:$0xff]
        %v1233 = vld [vmem:[#allocation14 + $0x110] sm:$0xff]
        %v1234 = vld [vmem:[#allocation14 + $0x118] sm:$0xff]
        %v1235 = vld [vmem:[#allocation14 + $0x120] sm:$0xff]
        %v1236 = vld [vmem:[#allocation14 + $0x128] sm:$0xff]
        %v1237 = vld [vmem:[#allocation14 + $0x130] sm:$0xff]
        %v1238 = vld [vmem:[#allocation14 + $0x138] sm:$0xff]
        %v1239 = vld [vmem:[#allocation14 + $0x140] sm:$0xff]
        %v1240 = vld [vmem:[#allocation14 + $0x148] sm:$0xff]
        %v1241 = vld [vmem:[#allocation14 + $0x150] sm:$0xff]
        %v1242 = vld [vmem:[#allocation14 + $0x158] sm:$0xff]
        %v1243 = vld [vmem:[#allocation14 + $0x160] sm:$0xff]
        %v1244 = vld [vmem:[#allocation14 + $0x168] sm:$0xff]
        %v1245 = vld [vmem:[#allocation14 + $0x170] sm:$0xff]
        %v1246 = vld [vmem:[#allocation14 + $0x178] sm:$0xff]
        %1247 = vmatprep.subr.mxu0 %v1245
        %1248 = vmatpush1.msra.mxu0 %v1244
        %1249 = vmatprep.subr.mxu0 %v1242
        %1250 = vmatpush1.msra.mxu0 %v1241
        %1251 = vmatprep.subr.mxu0 %v1239
        %1252 = vmatpush1.msra.mxu0 %v1238
        %1253 = vmatprep.subr.mxu0 %v1236
        %1254 = vmatpush1.msra.mxu0 %v1235
        %1255 = vmatprep.subr.mxu0 %v1233
        %1256 = vmatpush1.msra.mxu0 %v1232
        %1257 = vmatprep.subr.mxu0 %v1230
        %1258 = vmatpush1.msra.mxu0 %v1229
        %1259 = vmatprep.subr.mxu0 %v1227
        %1260 = vmatpush1.msra.mxu0 %v1226
        %1261 = vmatprep.subr.mxu0 %v1224
        %1262 = vmatpush1.msra.mxu0 %v1223
        %1263 = vmatprep.subr.mxu0 %v1221
        %1264 = vmatpush1.msra.mxu0 %v1220
        %1265 = vmatprep.subr.mxu0 %v1218
        %1266 = vmatpush1.msra.mxu0 %v1217
        %1267 = vmatprep.subr.mxu0 %v1215
        %1268 = vmatpush1.msra.mxu0 %v1214
        %1269 = vmatprep.subr.mxu0 %v1212
        %1270 = vmatpush1.msra.mxu0 %v1211
        %1271 = vmatprep.subr.mxu0 %v1209
        %1272 = vmatpush1.msra.mxu0 %v1208
        %1273 = vmatprep.subr.mxu0 %v1206
        %1274 = vmatpush1.msra.mxu0 %v1205
        %1275 = vmatprep.subr.mxu0 %v1203
        %1276 = vmatpush1.msra.mxu0 %v1202
        %1277 = vmatprep.subr.mxu0 %v1200
        %1278 = vmatpush1.msra.mxu0 %v1199
        %1279 = vmatprep.subr.mxu0 0.0
        %1280 = vmatpush2.msra.mxu0 0.0
        %1281 = vmatprep.subr.mxu0 0.0
        %1282 = vmatpush2.msra.mxu0 0.0
        %1283 = vmatprep.subr.mxu0 0.0
        %1284 = vmatpush2.msra.mxu0 0.0
        %1285 = vmatprep.subr.mxu0 0.0
        %1286 = vmatpush2.msra.mxu0 0.0
        %1287 = vmatprep.subr.mxu0 0.0
        %1288 = vmatpush2.msra.mxu0 0.0
        %1289 = vmatprep.subr.mxu0 0.0
        %1290 = vmatpush2.msra.mxu0 0.0
        %1291 = vmatprep.subr.mxu0 0.0
        %1292 = vmatpush2.msra.mxu0 0.0
        %1293 = vmatprep.subr.mxu0 0.0
        %1294 = vmatpush2.msra.mxu0 0.0
        %1295 = vmatprep.subr.mxu0 0.0
        %1296 = vmatpush2.msra.mxu0 0.0
        %1297 = vmatprep.subr.mxu0 0.0
        %1298 = vmatpush2.msra.mxu0 0.0
        %1299 = vmatprep.subr.mxu0 0.0
        %1300 = vmatpush2.msra.mxu0 0.0
        %1301 = vmatprep.subr.mxu0 0.0
        %1302 = vmatpush2.msra.mxu0 0.0
        %1303 = vmatprep.subr.mxu0 0.0
        %1304 = vmatpush2.msra.mxu0 0.0
        %1305 = vmatprep.subr.mxu0 0.0
        %1306 = vmatpush2.msra.mxu0 0.0
        %1307 = vmatprep.subr.mxu0 0.0
        %1308 = vmatpush2.msra.mxu0 0.0
        %1309 = vmatprep.subr.mxu0 0.0
        %1310 = vmatpush2.msra.mxu0 0.0
        %1311 = vmatprep.mubr.f32.mxu0 0.0
        %1312 = vmatmul.mubr.f32.gmra.mxu0 %v1198
        %v1313 = vpop.f32.mrf.mxu0
        %v1314 = vadd.f32 0.0, %v1313
        %v1315 = vpop.f32.mrf.mxu0
        %v1316 = vadd.f32 0.0, %v1315
        %1317 = vdwg.mxu0
        %1318 = vmatprep.subr.mxu0 0.0
        %1319 = vmatpush1.msra.mxu0 %v1246
        %1320 = vmatprep.subr.mxu0 0.0
        %1321 = vmatpush1.msra.mxu0 %v1243
        %1322 = vmatprep.subr.mxu0 0.0
        %1323 = vmatpush1.msra.mxu0 %v1240
        %1324 = vmatprep.subr.mxu0 0.0
        %1325 = vmatpush1.msra.mxu0 %v1237
        %1326 = vmatprep.subr.mxu0 0.0
        %1327 = vmatpush1.msra.mxu0 %v1234
        %1328 = vmatprep.subr.mxu0 0.0
        %1329 = vmatpush1.msra.mxu0 %v1231
        %1330 = vmatprep.subr.mxu0 0.0
        %1331 = vmatpush1.msra.mxu0 %v1228
        %1332 = vmatprep.subr.mxu0 0.0
        %1333 = vmatpush1.msra.mxu0 %v1225
        %1334 = vmatprep.subr.mxu0 0.0
        %1335 = vmatpush1.msra.mxu0 %v1222
        %1336 = vmatprep.subr.mxu0 0.0
        %1337 = vmatpush1.msra.mxu0 %v1219
        %1338 = vmatprep.subr.mxu0 0.0
        %1339 = vmatpush1.msra.mxu0 %v1216
        %1340 = vmatprep.subr.mxu0 0.0
        %1341 = vmatpush1.msra.mxu0 %v1213
        %1342 = vmatprep.subr.mxu0 0.0
        %1343 = vmatpush1.msra.mxu0 %v1210
        %1344 = vmatprep.subr.mxu0 0.0
        %1345 = vmatpush1.msra.mxu0 %v1207
        %1346 = vmatprep.subr.mxu0 0.0
        %1347 = vmatpush1.msra.mxu0 %v1204
        %1348 = vmatprep.subr.mxu0 0.0
        %1349 = vmatpush1.msra.mxu0 %v1201
        %1350 = vmatprep.subr.mxu0 0.0
        %1351 = vmatpush2.msra.mxu0 0.0
        %1352 = vmatprep.subr.mxu0 0.0
        %1353 = vmatpush2.msra.mxu0 0.0
        %1354 = vmatprep.subr.mxu0 0.0
        %1355 = vmatpush2.msra.mxu0 0.0
        %1356 = vmatprep.subr.mxu0 0.0
        %1357 = vmatpush2.msra.mxu0 0.0
        %1358 = vmatprep.subr.mxu0 0.0
        %1359 = vmatpush2.msra.mxu0 0.0
        %1360 = vmatprep.subr.mxu0 0.0
        %1361 = vmatpush2.msra.mxu0 0.0
        %1362 = vmatprep.subr.mxu0 0.0
        %1363 = vmatpush2.msra.mxu0 0.0
        %1364 = vmatprep.subr.mxu0 0.0
        %1365 = vmatpush2.msra.mxu0 0.0
        %1366 = vmatprep.subr.mxu0 0.0
        %1367 = vmatpush2.msra.mxu0 0.0
        %1368 = vmatprep.subr.mxu0 0.0
        %1369 = vmatpush2.msra.mxu0 0.0
        %1370 = vmatprep.subr.mxu0 0.0
        %1371 = vmatpush2.msra.mxu0 0.0
        %1372 = vmatprep.subr.mxu0 0.0
        %1373 = vmatpush2.msra.mxu0 0.0
        %1374 = vmatprep.subr.mxu0 0.0
        %1375 = vmatpush2.msra.mxu0 0.0
        %1376 = vmatprep.subr.mxu0 0.0
        %1377 = vmatpush2.msra.mxu0 0.0
        %1378 = vmatprep.subr.mxu0 0.0
        %1379 = vmatpush2.msra.mxu0 0.0
        %1380 = vmatprep.subr.mxu0 0.0
        %1381 = vmatpush2.msra.mxu0 0.0
        %1382 = vmatprep.mubr.f32.mxu0 0.0
        %1383 = vmatmul.mubr.f32.gmra.mxu0 %v1198
        %v1384 = vpop.f32.mrf.mxu0
        %v1385 = vadd.f32 0.0, %v1384
        %v1386 = vpop.f32.mrf.mxu0
        %1387 = vdwg.mxu0
        %v1388 = vld [vmem:[#allocation16] sm:$0xff]
        %v1389 = vld [vmem:[#allocation16 + $0x8] sm:$0xff]
        %v1390 = vld [vmem:[#allocation16 + $0x10] sm:$0xff]
        %v1391 = vld [vmem:[#allocation16 + $0x18] sm:$0xff]
        %v1392 = vld [vmem:[#allocation16 + $0x20] sm:$0xff]
        %v1393 = vld [vmem:[#allocation16 + $0x28] sm:$0xff]
        %v1394 = vld [vmem:[#allocation16 + $0x30] sm:$0xff]
        %v1395 = vld [vmem:[#allocation16 + $0x38] sm:$0xff]
        %v1396 = vld [vmem:[#allocation16 + $0x40] sm:$0xff]
        %v1397 = vld [vmem:[#allocation16 + $0x48] sm:$0xff]
        %v1398 = vld [vmem:[#allocation16 + $0x50] sm:$0xff]
        %v1399 = vld [vmem:[#allocation16 + $0x58] sm:$0xff]
        %v1400 = vld [vmem:[#allocation16 + $0x60] sm:$0xff]
        %v1401 = vld [vmem:[#allocation16 + $0x68] sm:$0xff]
        %v1402 = vld [vmem:[#allocation16 + $0x70] sm:$0xff]
        %v1403 = vld [vmem:[#allocation16 + $0x78] sm:$0xff]
        %v1404 = vld [vmem:[#allocation16 + $0x80] sm:$0xff]
        %v1405 = vld [vmem:[#allocation16 + $0x88] sm:$0xff]
        %v1406 = vld [vmem:[#allocation16 + $0x90] sm:$0xff]
        %v1407 = vld [vmem:[#allocation16 + $0x98] sm:$0xff]
        %v1408 = vld [vmem:[#allocation16 + $0xa0] sm:$0xff]
        %v1409 = vld [vmem:[#allocation16 + $0xa8] sm:$0xff]
        %v1410 = vld [vmem:[#allocation16 + $0xb0] sm:$0xff]
        %v1411 = vld [vmem:[#allocation16 + $0xb8] sm:$0xff]
        %v1412 = vld [vmem:[#allocation16 + $0xc0] sm:$0xff]
        %v1413 = vld [vmem:[#allocation16 + $0xc8] sm:$0xff]
        %v1414 = vld [vmem:[#allocation16 + $0xd0] sm:$0xff]
        %v1415 = vld [vmem:[#allocation16 + $0xd8] sm:$0xff]
        %v1416 = vld [vmem:[#allocation16 + $0xe0] sm:$0xff]
        %v1417 = vld [vmem:[#allocation16 + $0xe8] sm:$0xff]
        %v1418 = vld [vmem:[#allocation16 + $0xf0] sm:$0xff]
        %v1419 = vld [vmem:[#allocation16 + $0xf8] sm:$0xff]
        %1420 = vmatprep.subr.mxu0 %v1419
        %1421 = vmatpush1.msra.mxu0 %v1418
        %1422 = vmatprep.subr.mxu0 %v1417
        %1423 = vmatpush1.msra.mxu0 %v1416
        %1424 = vmatprep.subr.mxu0 %v1415
        %1425 = vmatpush1.msra.mxu0 %v1414
        %1426 = vmatprep.subr.mxu0 %v1413
        %1427 = vmatpush1.msra.mxu0 %v1412
        %1428 = vmatprep.subr.mxu0 %v1411
        %1429 = vmatpush1.msra.mxu0 %v1410
        %1430 = vmatprep.subr.mxu0 %v1409
        %1431 = vmatpush1.msra.mxu0 %v1408
        %1432 = vmatprep.subr.mxu0 %v1407
        %1433 = vmatpush1.msra.mxu0 %v1406
        %1434 = vmatprep.subr.mxu0 %v1405
        %1435 = vmatpush1.msra.mxu0 %v1404
        %1436 = vmatprep.subr.mxu0 %v1403
        %1437 = vmatpush1.msra.mxu0 %v1402
        %1438 = vmatprep.subr.mxu0 %v1401
        %1439 = vmatpush1.msra.mxu0 %v1400
        %1440 = vmatprep.subr.mxu0 %v1399
        %1441 = vmatpush1.msra.mxu0 %v1398
        %1442 = vmatprep.subr.mxu0 %v1397
        %1443 = vmatpush1.msra.mxu0 %v1396
        %1444 = vmatprep.subr.mxu0 %v1395
        %1445 = vmatpush1.msra.mxu0 %v1394
        %1446 = vmatprep.subr.mxu0 %v1393
        %1447 = vmatpush1.msra.mxu0 %v1392
        %1448 = vmatprep.subr.mxu0 %v1391
        %1449 = vmatpush1.msra.mxu0 %v1390
        %1450 = vmatprep.subr.mxu0 %v1389
        %1451 = vmatpush1.msra.mxu0 %v1388
        %1452 = vmatprep.subr.mxu0 0.0
        %1453 = vmatpush2.msra.mxu0 0.0
        %1454 = vmatprep.subr.mxu0 0.0
        %1455 = vmatpush2.msra.mxu0 0.0
        %1456 = vmatprep.subr.mxu0 0.0
        %1457 = vmatpush2.msra.mxu0 0.0
        %1458 = vmatprep.subr.mxu0 0.0
        %1459 = vmatpush2.msra.mxu0 0.0
        %1460 = vmatprep.subr.mxu0 0.0
        %1461 = vmatpush2.msra.mxu0 0.0
        %1462 = vmatprep.subr.mxu0 0.0
        %1463 = vmatpush2.msra.mxu0 0.0
        %1464 = vmatprep.subr.mxu0 0.0
        %1465 = vmatpush2.msra.mxu0 0.0
        %1466 = vmatprep.subr.mxu0 0.0
        %1467 = vmatpush2.msra.mxu0 0.0
        %1468 = vmatprep.subr.mxu0 0.0
        %1469 = vmatpush2.msra.mxu0 0.0
        %1470 = vmatprep.subr.mxu0 0.0
        %1471 = vmatpush2.msra.mxu0 0.0
        %1472 = vmatprep.subr.mxu0 0.0
        %1473 = vmatpush2.msra.mxu0 0.0
        %1474 = vmatprep.subr.mxu0 0.0
        %1475 = vmatpush2.msra.mxu0 0.0
        %1476 = vmatprep.subr.mxu0 0.0
        %1477 = vmatpush2.msra.mxu0 0.0
        %1478 = vmatprep.subr.mxu0 0.0
        %1479 = vmatpush2.msra.mxu0 0.0
        %1480 = vmatprep.subr.mxu0 0.0
        %1481 = vmatpush2.msra.mxu0 0.0
        %1482 = vmatprep.subr.mxu0 0.0
        %1483 = vmatpush2.msra.mxu0 0.0
        %1484 = vmatprep.mubr.f32.mxu0 0.0
        %1485 = vmatmul.mubr.f32.gmra.mxu0 %v606
        %v1486 = vpop.f32.mrf.mxu0
        %v1487 = vadd.f32 0.0, %v1486
        %v1488 = vpop.f32.mrf.mxu0
        %v1489 = vadd.f32 0.0, %v1488
        %1490 = vdwg.mxu0
        %v1491 = vadd.f32 %v1314, %v1487
        %v1492 = vxor.u32 %v1491, 2147483648
        %v1493 = vmul.f32 %v1492, 1.442695
        %v1494 = vpow.pop %v1493
        %v1495 = vadd.f32 %v1494, 1.0
        %v1496 = vrcp.pop %v1495
        %v1497 = vmul.f32 1.0, %v1496
        %v1498 = vadd.f32 %v1316, %v1489
        %v1499 = vxor.u32 %v1498, 2147483648
        %v1500 = vmul.f32 %v1499, 1.442695
        %v1501 = vpow.pop %v1500
        %v1502 = vadd.f32 %v1501, 1.0
        %v1503 = vrcp.pop %v1502
        %v1504 = vmul.f32 1.0, %v1503
        %v1505 = vmul.f32 %v1504, %v606
        %v1506 = vld [vmem:[#allocation17] sm:$0xff]
        %v1507 = vld [vmem:[#allocation17 + $0x8] sm:$0xff]
        %v1508 = vld [vmem:[#allocation17 + $0x10] sm:$0xff]
        %v1509 = vld [vmem:[#allocation17 + $0x18] sm:$0xff]
        %v1510 = vld [vmem:[#allocation17 + $0x20] sm:$0xff]
        %v1511 = vld [vmem:[#allocation17 + $0x28] sm:$0xff]
        %v1512 = vld [vmem:[#allocation17 + $0x30] sm:$0xff]
        %v1513 = vld [vmem:[#allocation17 + $0x38] sm:$0xff]
        %v1514 = vld [vmem:[#allocation17 + $0x40] sm:$0xff]
        %v1515 = vld [vmem:[#allocation17 + $0x48] sm:$0xff]
        %v1516 = vld [vmem:[#allocation17 + $0x50] sm:$0xff]
        %v1517 = vld [vmem:[#allocation17 + $0x58] sm:$0xff]
        %v1518 = vld [vmem:[#allocation17 + $0x60] sm:$0xff]
        %v1519 = vld [vmem:[#allocation17 + $0x68] sm:$0xff]
        %v1520 = vld [vmem:[#allocation17 + $0x70] sm:$0xff]
        %v1521 = vld [vmem:[#allocation17 + $0x78] sm:$0xff]
        %1522 = vmatprep.subr.mxu0 0.0
        %1523 = vmatpush1.msra.mxu0 %v1521
        %1524 = vmatprep.subr.mxu0 0.0
        %1525 = vmatpush1.msra.mxu0 %v1520
        %1526 = vmatprep.subr.mxu0 0.0
        %1527 = vmatpush1.msra.mxu0 %v1519
        %1528 = vmatprep.subr.mxu0 0.0
        %1529 = vmatpush1.msra.mxu0 %v1518
        %1530 = vmatprep.subr.mxu0 0.0
        %1531 = vmatpush1.msra.mxu0 %v1517
        %1532 = vmatprep.subr.mxu0 0.0
        %1533 = vmatpush1.msra.mxu0 %v1516
        %1534 = vmatprep.subr.mxu0 0.0
        %1535 = vmatpush1.msra.mxu0 %v1515
        %1536 = vmatprep.subr.mxu0 0.0
        %1537 = vmatpush1.msra.mxu0 %v1514
        %1538 = vmatprep.subr.mxu0 0.0
        %1539 = vmatpush1.msra.mxu0 %v1513
        %1540 = vmatprep.subr.mxu0 0.0
        %1541 = vmatpush1.msra.mxu0 %v1512
        %1542 = vmatprep.subr.mxu0 0.0
        %1543 = vmatpush1.msra.mxu0 %v1511
        %1544 = vmatprep.subr.mxu0 0.0
        %1545 = vmatpush1.msra.mxu0 %v1510
        %1546 = vmatprep.subr.mxu0 0.0
        %1547 = vmatpush1.msra.mxu0 %v1509
        %1548 = vmatprep.subr.mxu0 0.0
        %1549 = vmatpush1.msra.mxu0 %v1508
        %1550 = vmatprep.subr.mxu0 0.0
        %1551 = vmatpush1.msra.mxu0 %v1507
        %1552 = vmatprep.subr.mxu0 0.0
        %1553 = vmatpush1.msra.mxu0 %v1506
        %1554 = vmatprep.subr.mxu0 0.0
        %1555 = vmatpush2.msra.mxu0 0.0
        %1556 = vmatprep.subr.mxu0 0.0
        %1557 = vmatpush2.msra.mxu0 0.0
        %1558 = vmatprep.subr.mxu0 0.0
        %1559 = vmatpush2.msra.mxu0 0.0
        %1560 = vmatprep.subr.mxu0 0.0
        %1561 = vmatpush2.msra.mxu0 0.0
        %1562 = vmatprep.subr.mxu0 0.0
        %1563 = vmatpush2.msra.mxu0 0.0
        %1564 = vmatprep.subr.mxu0 0.0
        %1565 = vmatpush2.msra.mxu0 0.0
        %1566 = vmatprep.subr.mxu0 0.0
        %1567 = vmatpush2.msra.mxu0 0.0
        %1568 = vmatprep.subr.mxu0 0.0
        %1569 = vmatpush2.msra.mxu0 0.0
        %1570 = vmatprep.subr.mxu0 0.0
        %1571 = vmatpush2.msra.mxu0 0.0
        %1572 = vmatprep.subr.mxu0 0.0
        %1573 = vmatpush2.msra.mxu0 0.0
        %1574 = vmatprep.subr.mxu0 0.0
        %1575 = vmatpush2.msra.mxu0 0.0
        %1576 = vmatprep.subr.mxu0 0.0
        %1577 = vmatpush2.msra.mxu0 0.0
        %1578 = vmatprep.subr.mxu0 0.0
        %1579 = vmatpush2.msra.mxu0 0.0
        %1580 = vmatprep.subr.mxu0 0.0
        %1581 = vmatpush2.msra.mxu0 0.0
        %1582 = vmatprep.subr.mxu0 0.0
        %1583 = vmatpush2.msra.mxu0 0.0
        %1584 = vmatprep.subr.mxu0 0.0
        %1585 = vmatpush2.msra.mxu0 0.0
        %1586 = vmatprep.mubr.f32.mxu0 0.0
        %1587 = vmatmul.mubr.f32.gmra.mxu0 %v1505
        %v1588 = vpop.f32.mrf.mxu0
        %v1589 = vadd.f32 0.0, %v1588
        %v1590 = vpop.f32.mrf.mxu0
        %1591 = vdwg.mxu0
        %v1592 = vadd.f32 %v1385, %v1589
        %v1593 = vtanh.pop %v1592
        %v1594 = vsub.f32 1.0, %v1497
        %v1595 = vmul.f32 %v1594, %v606
        %v1596 = vmul.f32 %v1497, %v1593
        %v1597 = vadd.f32 %v1595, %v1596
        %1598 = vmatprep.subr.mxu0 %v638
        %1599 = vmatpush1.msra.mxu0 %v637
        %1600 = vmatprep.subr.mxu0 %v636
        %1601 = vmatpush1.msra.mxu0 %v635
        %1602 = vmatprep.subr.mxu0 %v634
        %1603 = vmatpush1.msra.mxu0 %v633
        %1604 = vmatprep.subr.mxu0 %v632
        %1605 = vmatpush1.msra.mxu0 %v631
        %1606 = vmatprep.subr.mxu0 %v630
        %1607 = vmatpush1.msra.mxu0 %v629
        %1608 = vmatprep.subr.mxu0 %v628
        %1609 = vmatpush1.msra.mxu0 %v627
        %1610 = vmatprep.subr.mxu0 %v626
        %1611 = vmatpush1.msra.mxu0 %v625
        %1612 = vmatprep.subr.mxu0 %v624
        %1613 = vmatpush1.msra.mxu0 %v623
        %1614 = vmatprep.subr.mxu0 %v622
        %1615 = vmatpush1.msra.mxu0 %v621
        %1616 = vmatprep.subr.mxu0 %v620
        %1617 = vmatpush1.msra.mxu0 %v619
        %1618 = vmatprep.subr.mxu0 %v618
        %1619 = vmatpush1.msra.mxu0 %v617
        %1620 = vmatprep.subr.mxu0 %v616
        %1621 = vmatpush1.msra.mxu0 %v615
        %1622 = vmatprep.subr.mxu0 %v614
        %1623 = vmatpush1.msra.mxu0 %v613
        %1624 = vmatprep.subr.mxu0 %v612
        %1625 = vmatpush1.msra.mxu0 %v611
        %1626 = vmatprep.subr.mxu0 %v610
        %1627 = vmatpush1.msra.mxu0 %v609
        %1628 = vmatprep.subr.mxu0 %v608
        %1629 = vmatpush1.msra.mxu0 %v607
        %1630 = vmatprep.subr.mxu0 0.0
        %1631 = vmatpush2.msra.mxu0 0.0
        %1632 = vmatprep.subr.mxu0 0.0
        %1633 = vmatpush2.msra.mxu0 0.0
        %1634 = vmatprep.subr.mxu0 0.0
        %1635 = vmatpush2.msra.mxu0 0.0
        %1636 = vmatprep.subr.mxu0 0.0
        %1637 = vmatpush2.msra.mxu0 0.0
        %1638 = vmatprep.subr.mxu0 0.0
        %1639 = vmatpush2.msra.mxu0 0.0
        %1640 = vmatprep.subr.mxu0 0.0
        %1641 = vmatpush2.msra.mxu0 0.0
        %1642 = vmatprep.subr.mxu0 0.0
        %1643 = vmatpush2.msra.mxu0 0.0
        %1644 = vmatprep.subr.mxu0 0.0
        %1645 = vmatpush2.msra.mxu0 0.0
        %1646 = vmatprep.subr.mxu0 0.0
        %1647 = vmatpush2.msra.mxu0 0.0
        %1648 = vmatprep.subr.mxu0 0.0
        %1649 = vmatpush2.msra.mxu0 0.0
        %1650 = vmatprep.subr.mxu0 0.0
        %1651 = vmatpush2.msra.mxu0 0.0
        %1652 = vmatprep.subr.mxu0 0.0
        %1653 = vmatpush2.msra.mxu0 0.0
        %1654 = vmatprep.subr.mxu0 0.0
        %1655 = vmatpush2.msra.mxu0 0.0
        %1656 = vmatprep.subr.mxu0 0.0
        %1657 = vmatpush2.msra.mxu0 0.0
        %1658 = vmatprep.subr.mxu0 0.0
        %1659 = vmatpush2.msra.mxu0 0.0
        %1660 = vmatprep.subr.mxu0 0.0
        %1661 = vmatpush2.msra.mxu0 0.0
        %1662 = vmatprep.mubr.f32.mxu0 0.0
        %1663 = vmatmul.mubr.f32.gmra.mxu0 %v1597
        %v1664 = vpop.f32.mrf.mxu0
        %v1665 = vadd.f32 0.0, %v1664
        %v1666 = vpop.f32.mrf.mxu0
        %v1667 = vadd.f32 0.0, %v1666
        %1668 = vdwg.mxu0
        %1669 = vmatprep.subr.mxu0 0.0
        %1670 = vmatpush1.msra.mxu0 0.0
        %1671 = vmatprep.subr.mxu0 0.0
        %1672 = vmatpush1.msra.mxu0 0.0
        %1673 = vmatprep.subr.mxu0 0.0
        %1674 = vmatpush1.msra.mxu0 0.0
        %1675 = vmatprep.subr.mxu0 0.0
        %1676 = vmatpush1.msra.mxu0 0.0
        %1677 = vmatprep.subr.mxu0 0.0
        %1678 = vmatpush1.msra.mxu0 0.0
        %1679 = vmatprep.subr.mxu0 0.0
        %1680 = vmatpush1.msra.mxu0 0.0
        %1681 = vmatprep.subr.mxu0 0.0
        %1682 = vmatpush1.msra.mxu0 0.0
        %1683 = vmatprep.subr.mxu0 0.0
        %1684 = vmatpush1.msra.mxu0 0.0
        %1685 = vmatprep.subr.mxu0 0.0
        %1686 = vmatpush1.msra.mxu0 0.0
        %1687 = vmatprep.subr.mxu0 0.0
        %1688 = vmatpush1.msra.mxu0 0.0
        %1689 = vmatprep.subr.mxu0 0.0
        %1690 = vmatpush1.msra.mxu0 0.0
        %1691 = vmatprep.subr.mxu0 0.0
        %1692 = vmatpush1.msra.mxu0 0.0
        %1693 = vmatprep.subr.mxu0 0.0
        %1694 = vmatpush1.msra.mxu0 0.0
        %1695 = vmatprep.subr.mxu0 0.0
        %1696 = vmatpush1.msra.mxu0 0.0
        %1697 = vmatprep.subr.mxu0 0.0
        %1698 = vmatpush1.msra.mxu0 0.0
        %1699 = vmatprep.subr.mxu0 0.0
        %1700 = vmatpush1.msra.mxu0 %v1667
        %1701 = vmatprep.subr.mxu0 0.0
        %1702 = vmatpush2.msra.mxu0 0.0
        %1703 = vmatprep.subr.mxu0 0.0
        %1704 = vmatpush2.msra.mxu0 0.0
        %1705 = vmatprep.subr.mxu0 0.0
        %1706 = vmatpush2.msra.mxu0 0.0
        %1707 = vmatprep.subr.mxu0 0.0
        %1708 = vmatpush2.msra.mxu0 0.0
        %1709 = vmatprep.subr.mxu0 0.0
        %1710 = vmatpush2.msra.mxu0 0.0
        %1711 = vmatprep.subr.mxu0 0.0
        %1712 = vmatpush2.msra.mxu0 0.0
        %1713 = vmatprep.subr.mxu0 0.0
        %1714 = vmatpush2.msra.mxu0 0.0
        %1715 = vmatprep.subr.mxu0 0.0
        %1716 = vmatpush2.msra.mxu0 0.0
        %1717 = vmatprep.subr.mxu0 0.0
        %1718 = vmatpush2.msra.mxu0 0.0
        %1719 = vmatprep.subr.mxu0 0.0
        %1720 = vmatpush2.msra.mxu0 0.0
        %1721 = vmatprep.subr.mxu0 0.0
        %1722 = vmatpush2.msra.mxu0 0.0
        %1723 = vmatprep.subr.mxu0 0.0
        %1724 = vmatpush2.msra.mxu0 0.0
        %1725 = vmatprep.subr.mxu0 0.0
        %1726 = vmatpush2.msra.mxu0 0.0
        %1727 = vmatprep.subr.mxu0 0.0
        %1728 = vmatpush2.msra.mxu0 0.0
        %1729 = vmatprep.subr.mxu0 0.0
        %1730 = vmatpush2.msra.mxu0 0.0
        %1731 = vmatprep.subr.mxu0 0.0
        %1732 = vmatpush2.msra.mxu0 0.0
        %1733 = vmatprep.mubr.f32.mxu0 0.0
        %1734 = vmatmul.mubr.f32.gmra.mxu0 %v712
        %v1735 = vpop.f32.mrf.mxu0
        %v1736 = vadd.f32 0.0, %v1735
        %v1737 = vpop.f32.mrf.mxu0
        %1738 = vdwg.mxu0
        %1739 = vmatprep.subr.mxu0 0.0
        %1740 = vmatpush1.msra.mxu0 0.0
        %1741 = vmatprep.subr.mxu0 0.0
        %1742 = vmatpush1.msra.mxu0 0.0
        %1743 = vmatprep.subr.mxu0 0.0
        %1744 = vmatpush1.msra.mxu0 0.0
        %1745 = vmatprep.subr.mxu0 0.0
        %1746 = vmatpush1.msra.mxu0 0.0
        %1747 = vmatprep.subr.mxu0 0.0
        %1748 = vmatpush1.msra.mxu0 0.0
        %1749 = vmatprep.subr.mxu0 0.0
        %1750 = vmatpush1.msra.mxu0 0.0
        %1751 = vmatprep.subr.mxu0 0.0
        %1752 = vmatpush1.msra.mxu0 0.0
        %1753 = vmatprep.subr.mxu0 0.0
        %1754 = vmatpush1.msra.mxu0 0.0
        %1755 = vmatprep.subr.mxu0 0.0
        %1756 = vmatpush1.msra.mxu0 0.0
        %1757 = vmatprep.subr.mxu0 0.0
        %1758 = vmatpush1.msra.mxu0 0.0
        %1759 = vmatprep.subr.mxu0 0.0
        %1760 = vmatpush1.msra.mxu0 0.0
        %1761 = vmatprep.subr.mxu0 0.0
        %1762 = vmatpush1.msra.mxu0 0.0
        %1763 = vmatprep.subr.mxu0 0.0
        %1764 = vmatpush1.msra.mxu0 0.0
        %1765 = vmatprep.subr.mxu0 0.0
        %1766 = vmatpush1.msra.mxu0 0.0
        %1767 = vmatprep.subr.mxu0 0.0
        %1768 = vmatpush1.msra.mxu0 0.0
        %1769 = vmatprep.subr.mxu0 0.0
        %1770 = vmatpush1.msra.mxu0 %v1665
        %1771 = vmatprep.subr.mxu0 0.0
        %1772 = vmatpush2.msra.mxu0 0.0
        %1773 = vmatprep.subr.mxu0 0.0
        %1774 = vmatpush2.msra.mxu0 0.0
        %1775 = vmatprep.subr.mxu0 0.0
        %1776 = vmatpush2.msra.mxu0 0.0
        %1777 = vmatprep.subr.mxu0 0.0
        %1778 = vmatpush2.msra.mxu0 0.0
        %1779 = vmatprep.subr.mxu0 0.0
        %1780 = vmatpush2.msra.mxu0 0.0
        %1781 = vmatprep.subr.mxu0 0.0
        %1782 = vmatpush2.msra.mxu0 0.0
        %1783 = vmatprep.subr.mxu0 0.0
        %1784 = vmatpush2.msra.mxu0 0.0
        %1785 = vmatprep.subr.mxu0 0.0
        %1786 = vmatpush2.msra.mxu0 0.0
        %1787 = vmatprep.subr.mxu0 0.0
        %1788 = vmatpush2.msra.mxu0 0.0
        %1789 = vmatprep.subr.mxu0 0.0
        %1790 = vmatpush2.msra.mxu0 0.0
        %1791 = vmatprep.subr.mxu0 0.0
        %1792 = vmatpush2.msra.mxu0 0.0
        %1793 = vmatprep.subr.mxu0 0.0
        %1794 = vmatpush2.msra.mxu0 0.0
        %1795 = vmatprep.subr.mxu0 0.0
        %1796 = vmatpush2.msra.mxu0 0.0
        %1797 = vmatprep.subr.mxu0 0.0
        %1798 = vmatpush2.msra.mxu0 0.0
        %1799 = vmatprep.subr.mxu0 0.0
        %1800 = vmatpush2.msra.mxu0 0.0
        %1801 = vmatprep.subr.mxu0 0.0
        %1802 = vmatpush2.msra.mxu0 0.0
        %1803 = vmatprep.mubr.f32.mxu0 0.0
        %1804 = vmatmul.mubr.f32.gmra.mxu0 %v785
        %v1805 = vpop.f32.mrf.mxu0
        %v1806 = vadd.f32 %v1736, %v1805
        %v1807 = vpop.f32.mrf.mxu0
        %1808 = vdwg.mxu0
        %v1809 = vadd.f32 %v1806, %v597
        %v1810 = vtanh.pop %v1809
        %1811 = vmatprep.subr.mxu0 %v890
        %1812 = vmatpush1.msra.mxu0 %v889
        %1813 = vmatprep.subr.mxu0 %v888
        %1814 = vmatpush1.msra.mxu0 %v887
        %1815 = vmatprep.subr.mxu0 %v886
        %1816 = vmatpush1.msra.mxu0 %v885
        %1817 = vmatprep.subr.mxu0 %v884
        %1818 = vmatpush1.msra.mxu0 %v883
        %1819 = vmatprep.subr.mxu0 %v882
        %1820 = vmatpush1.msra.mxu0 %v881
        %1821 = vmatprep.subr.mxu0 %v880
        %1822 = vmatpush1.msra.mxu0 %v879
        %1823 = vmatprep.subr.mxu0 %v878
        %1824 = vmatpush1.msra.mxu0 %v877
        %1825 = vmatprep.subr.mxu0 %v876
        %1826 = vmatpush1.msra.mxu0 %v875
        %1827 = vmatprep.subr.mxu0 %v874
        %1828 = vmatpush1.msra.mxu0 %v873
        %1829 = vmatprep.subr.mxu0 %v872
        %1830 = vmatpush1.msra.mxu0 %v871
        %1831 = vmatprep.subr.mxu0 %v870
        %1832 = vmatpush1.msra.mxu0 %v869
        %1833 = vmatprep.subr.mxu0 %v868
        %1834 = vmatpush1.msra.mxu0 %v867
        %1835 = vmatprep.subr.mxu0 %v866
        %1836 = vmatpush1.msra.mxu0 %v865
        %1837 = vmatprep.subr.mxu0 %v864
        %1838 = vmatpush1.msra.mxu0 %v863
        %1839 = vmatprep.subr.mxu0 %v862
        %1840 = vmatpush1.msra.mxu0 %v861
        %1841 = vmatprep.subr.mxu0 %v860
        %1842 = vmatpush1.msra.mxu0 %v859
        %1843 = vmatprep.subr.mxu0 0.0
        %1844 = vmatpush2.msra.mxu0 0.0
        %1845 = vmatprep.subr.mxu0 0.0
        %1846 = vmatpush2.msra.mxu0 0.0
        %1847 = vmatprep.subr.mxu0 0.0
        %1848 = vmatpush2.msra.mxu0 0.0
        %1849 = vmatprep.subr.mxu0 0.0
        %1850 = vmatpush2.msra.mxu0 0.0
        %1851 = vmatprep.subr.mxu0 0.0
        %1852 = vmatpush2.msra.mxu0 0.0
        %1853 = vmatprep.subr.mxu0 0.0
        %1854 = vmatpush2.msra.mxu0 0.0
        %1855 = vmatprep.subr.mxu0 0.0
        %1856 = vmatpush2.msra.mxu0 0.0
        %1857 = vmatprep.subr.mxu0 0.0
        %1858 = vmatpush2.msra.mxu0 0.0
        %1859 = vmatprep.subr.mxu0 0.0
        %1860 = vmatpush2.msra.mxu0 0.0
        %1861 = vmatprep.subr.mxu0 0.0
        %1862 = vmatpush2.msra.mxu0 0.0
        %1863 = vmatprep.subr.mxu0 0.0
        %1864 = vmatpush2.msra.mxu0 0.0
        %1865 = vmatprep.subr.mxu0 0.0
        %1866 = vmatpush2.msra.mxu0 0.0
        %1867 = vmatprep.subr.mxu0 0.0
        %1868 = vmatpush2.msra.mxu0 0.0
        %1869 = vmatprep.subr.mxu0 0.0
        %1870 = vmatpush2.msra.mxu0 0.0
        %1871 = vmatprep.subr.mxu0 0.0
        %1872 = vmatpush2.msra.mxu0 0.0
        %1873 = vmatprep.subr.mxu0 0.0
        %1874 = vmatpush2.msra.mxu0 0.0
        %1875 = vmatprep.mubr.f32.mxu0 0.0
        %1876 = vmatmul.mubr.f32.gmra.mxu0 %v1810
        %v1877 = vpop.f32.mrf.mxu0
        %v1878 = vadd.f32 0.0, %v1877
        %v1879 = vpop.f32.mrf.mxu0
        %v1880 = vadd.f32 0.0, %v1879
        %1881 = vdwg.mxu0
        %1882 = vmatprep.subr.mxu0 0.0
        %1883 = vmatpush1.msra.mxu0 0.0
        %1884 = vmatprep.subr.mxu0 0.0
        %1885 = vmatpush1.msra.mxu0 0.0
        %1886 = vmatprep.subr.mxu0 0.0
        %1887 = vmatpush1.msra.mxu0 0.0
        %1888 = vmatprep.subr.mxu0 0.0
        %1889 = vmatpush1.msra.mxu0 0.0
        %1890 = vmatprep.subr.mxu0 0.0
        %1891 = vmatpush1.msra.mxu0 0.0
        %1892 = vmatprep.subr.mxu0 0.0
        %1893 = vmatpush1.msra.mxu0 0.0
        %1894 = vmatprep.subr.mxu0 0.0
        %1895 = vmatpush1.msra.mxu0 0.0
        %1896 = vmatprep.subr.mxu0 0.0
        %1897 = vmatpush1.msra.mxu0 0.0
        %1898 = vmatprep.subr.mxu0 0.0
        %1899 = vmatpush1.msra.mxu0 0.0
        %1900 = vmatprep.subr.mxu0 0.0
        %1901 = vmatpush1.msra.mxu0 0.0
        %1902 = vmatprep.subr.mxu0 0.0
        %1903 = vmatpush1.msra.mxu0 0.0
        %1904 = vmatprep.subr.mxu0 0.0
        %1905 = vmatpush1.msra.mxu0 0.0
        %1906 = vmatprep.subr.mxu0 0.0
        %1907 = vmatpush1.msra.mxu0 0.0
        %1908 = vmatprep.subr.mxu0 0.0
        %1909 = vmatpush1.msra.mxu0 0.0
        %1910 = vmatprep.subr.mxu0 0.0
        %1911 = vmatpush1.msra.mxu0 0.0
        %1912 = vmatprep.subr.mxu0 0.0
        %1913 = vmatpush1.msra.mxu0 %v1880
        %1914 = vmatprep.subr.mxu0 0.0
        %1915 = vmatpush2.msra.mxu0 0.0
        %1916 = vmatprep.subr.mxu0 0.0
        %1917 = vmatpush2.msra.mxu0 0.0
        %1918 = vmatprep.subr.mxu0 0.0
        %1919 = vmatpush2.msra.mxu0 0.0
        %1920 = vmatprep.subr.mxu0 0.0
        %1921 = vmatpush2.msra.mxu0 0.0
        %1922 = vmatprep.subr.mxu0 0.0
        %1923 = vmatpush2.msra.mxu0 0.0
        %1924 = vmatprep.subr.mxu0 0.0
        %1925 = vmatpush2.msra.mxu0 0.0
        %1926 = vmatprep.subr.mxu0 0.0
        %1927 = vmatpush2.msra.mxu0 0.0
        %1928 = vmatprep.subr.mxu0 0.0
        %1929 = vmatpush2.msra.mxu0 0.0
        %1930 = vmatprep.subr.mxu0 0.0
        %1931 = vmatpush2.msra.mxu0 0.0
        %1932 = vmatprep.subr.mxu0 0.0
        %1933 = vmatpush2.msra.mxu0 0.0
        %1934 = vmatprep.subr.mxu0 0.0
        %1935 = vmatpush2.msra.mxu0 0.0
        %1936 = vmatprep.subr.mxu0 0.0
        %1937 = vmatpush2.msra.mxu0 0.0
        %1938 = vmatprep.subr.mxu0 0.0
        %1939 = vmatpush2.msra.mxu0 0.0
        %1940 = vmatprep.subr.mxu0 0.0
        %1941 = vmatpush2.msra.mxu0 0.0
        %1942 = vmatprep.subr.mxu0 0.0
        %1943 = vmatpush2.msra.mxu0 0.0
        %1944 = vmatprep.subr.mxu0 0.0
        %1945 = vmatpush2.msra.mxu0 0.0
        %1946 = vmatprep.mubr.f32.mxu0 0.0
        %1947 = vmatmul.mubr.f32.gmra.mxu0 %v963
        %v1948 = vpop.f32.mrf.mxu0
        %v1949 = vadd.f32 0.0, %v1948
        %v1950 = vpop.f32.mrf.mxu0
        %1951 = vdwg.mxu0
        %1952 = vmatprep.subr.mxu0 0.0
        %1953 = vmatpush1.msra.mxu0 0.0
        %1954 = vmatprep.subr.mxu0 0.0
        %1955 = vmatpush1.msra.mxu0 0.0
        %1956 = vmatprep.subr.mxu0 0.0
        %1957 = vmatpush1.msra.mxu0 0.0
        %1958 = vmatprep.subr.mxu0 0.0
        %1959 = vmatpush1.msra.mxu0 0.0
        %1960 = vmatprep.subr.mxu0 0.0
        %1961 = vmatpush1.msra.mxu0 0.0
        %1962 = vmatprep.subr.mxu0 0.0
        %1963 = vmatpush1.msra.mxu0 0.0
        %1964 = vmatprep.subr.mxu0 0.0
        %1965 = vmatpush1.msra.mxu0 0.0
        %1966 = vmatprep.subr.mxu0 0.0
        %1967 = vmatpush1.msra.mxu0 0.0
        %1968 = vmatprep.subr.mxu0 0.0
        %1969 = vmatpush1.msra.mxu0 0.0
        %1970 = vmatprep.subr.mxu0 0.0
        %1971 = vmatpush1.msra.mxu0 0.0
        %1972 = vmatprep.subr.mxu0 0.0
        %1973 = vmatpush1.msra.mxu0 0.0
        %1974 = vmatprep.subr.mxu0 0.0
        %1975 = vmatpush1.msra.mxu0 0.0
        %1976 = vmatprep.subr.mxu0 0.0
        %1977 = vmatpush1.msra.mxu0 0.0
        %1978 = vmatprep.subr.mxu0 0.0
        %1979 = vmatpush1.msra.mxu0 0.0
        %1980 = vmatprep.subr.mxu0 0.0
        %1981 = vmatpush1.msra.mxu0 0.0
        %1982 = vmatprep.subr.mxu0 0.0
        %1983 = vmatpush1.msra.mxu0 %v1878
        %1984 = vmatprep.subr.mxu0 0.0
        %1985 = vmatpush2.msra.mxu0 0.0
        %1986 = vmatprep.subr.mxu0 0.0
        %1987 = vmatpush2.msra.mxu0 0.0
        %1988 = vmatprep.subr.mxu0 0.0
        %1989 = vmatpush2.msra.mxu0 0.0
        %1990 = vmatprep.subr.mxu0 0.0
        %1991 = vmatpush2.msra.mxu0 0.0
        %1992 = vmatprep.subr.mxu0 0.0
        %1993 = vmatpush2.msra.mxu0 0.0
        %1994 = vmatprep.subr.mxu0 0.0
        %1995 = vmatpush2.msra.mxu0 0.0
        %1996 = vmatprep.subr.mxu0 0.0
        %1997 = vmatpush2.msra.mxu0 0.0
        %1998 = vmatprep.subr.mxu0 0.0
        %1999 = vmatpush2.msra.mxu0 0.0
        %2000 = vmatprep.subr.mxu0 0.0
        %2001 = vmatpush2.msra.mxu0 0.0
        %2002 = vmatprep.subr.mxu0 0.0
        %2003 = vmatpush2.msra.mxu0 0.0
        %2004 = vmatprep.subr.mxu0 0.0
        %2005 = vmatpush2.msra.mxu0 0.0
        %2006 = vmatprep.subr.mxu0 0.0
        %2007 = vmatpush2.msra.mxu0 0.0
        %2008 = vmatprep.subr.mxu0 0.0
        %2009 = vmatpush2.msra.mxu0 0.0
        %2010 = vmatprep.subr.mxu0 0.0
        %2011 = vmatpush2.msra.mxu0 0.0
        %2012 = vmatprep.subr.mxu0 0.0
        %2013 = vmatpush2.msra.mxu0 0.0
        %2014 = vmatprep.subr.mxu0 0.0
        %2015 = vmatpush2.msra.mxu0 0.0
        %2016 = vmatprep.mubr.f32.mxu0 0.0
        %2017 = vmatmul.mubr.f32.gmra.mxu0 %v1036
        %v2018 = vpop.f32.mrf.mxu0
        %v2019 = vadd.f32 %v1949, %v2018
        %v2020 = vpop.f32.mrf.mxu0
        %2021 = vdwg.mxu0
        %v2022 = vadd.f32 %v2019, %v604
        %v2023 = vtanh.pop %v2022
        %2024 = vmatprep.subr.mxu0 0.0
        %2025 = vmatpush1.msra.mxu0 %v1126
        %2026 = vmatprep.subr.mxu0 0.0
        %2027 = vmatpush1.msra.mxu0 %v1125
        %2028 = vmatprep.subr.mxu0 0.0
        %2029 = vmatpush1.msra.mxu0 %v1124
        %2030 = vmatprep.subr.mxu0 0.0
        %2031 = vmatpush1.msra.mxu0 %v1123
        %2032 = vmatprep.subr.mxu0 0.0
        %2033 = vmatpush1.msra.mxu0 %v1122
        %2034 = vmatprep.subr.mxu0 0.0
        %2035 = vmatpush1.msra.mxu0 %v1121
        %2036 = vmatprep.subr.mxu0 0.0
        %2037 = vmatpush1.msra.mxu0 %v1120
        %2038 = vmatprep.subr.mxu0 0.0
        %2039 = vmatpush1.msra.mxu0 %v1119
        %2040 = vmatprep.subr.mxu0 0.0
        %2041 = vmatpush1.msra.mxu0 %v1118
        %2042 = vmatprep.subr.mxu0 0.0
        %2043 = vmatpush1.msra.mxu0 %v1117
        %2044 = vmatprep.subr.mxu0 0.0
        %2045 = vmatpush1.msra.mxu0 %v1116
        %2046 = vmatprep.subr.mxu0 0.0
        %2047 = vmatpush1.msra.mxu0 %v1115
        %2048 = vmatprep.subr.mxu0 0.0
        %2049 = vmatpush1.msra.mxu0 %v1114
        %2050 = vmatprep.subr.mxu0 0.0
        %2051 = vmatpush1.msra.mxu0 %v1113
        %2052 = vmatprep.subr.mxu0 0.0
        %2053 = vmatpush1.msra.mxu0 %v1112
        %2054 = vmatprep.subr.mxu0 0.0
        %2055 = vmatpush1.msra.mxu0 %v1111
        %2056 = vmatprep.subr.mxu0 0.0
        %2057 = vmatpush2.msra.mxu0 0.0
        %2058 = vmatprep.subr.mxu0 0.0
        %2059 = vmatpush2.msra.mxu0 0.0
        %2060 = vmatprep.subr.mxu0 0.0
        %2061 = vmatpush2.msra.mxu0 0.0
        %2062 = vmatprep.subr.mxu0 0.0
        %2063 = vmatpush2.msra.mxu0 0.0
        %2064 = vmatprep.subr.mxu0 0.0
        %2065 = vmatpush2.msra.mxu0 0.0
        %2066 = vmatprep.subr.mxu0 0.0
        %2067 = vmatpush2.msra.mxu0 0.0
        %2068 = vmatprep.subr.mxu0 0.0
        %2069 = vmatpush2.msra.mxu0 0.0
        %2070 = vmatprep.subr.mxu0 0.0
        %2071 = vmatpush2.msra.mxu0 0.0
        %2072 = vmatprep.subr.mxu0 0.0
        %2073 = vmatpush2.msra.mxu0 0.0
        %2074 = vmatprep.subr.mxu0 0.0
        %2075 = vmatpush2.msra.mxu0 0.0
        %2076 = vmatprep.subr.mxu0 0.0
        %2077 = vmatpush2.msra.mxu0 0.0
        %2078 = vmatprep.subr.mxu0 0.0
        %2079 = vmatpush2.msra.mxu0 0.0
        %2080 = vmatprep.subr.mxu0 0.0
        %2081 = vmatpush2.msra.mxu0 0.0
        %2082 = vmatprep.subr.mxu0 0.0
        %2083 = vmatpush2.msra.mxu0 0.0
        %2084 = vmatprep.subr.mxu0 0.0
        %2085 = vmatpush2.msra.mxu0 0.0
        %2086 = vmatprep.subr.mxu0 0.0
        %2087 = vmatpush2.msra.mxu0 0.0
        %2088 = vmatprep.mubr.f32.mxu0 0.0
        %2089 = vmatmul.mubr.f32.gmra.mxu0 %v2023
        %v2090 = vpop.f32.mrf.mxu0
        %v2091 = vadd.f32 0.0, %v2090
        %v2092 = vpop.f32.mrf.mxu0
        %2093 = vdwg.mxu0
        %v2094 = vadd.f32 %v1110, %v2091
        %v2095 = vtanh.pop %v2094
        %2096 = vmatprep.subr.mxu0 %v1245
        %2097 = vmatpush1.msra.mxu0 %v1244
        %2098 = vmatprep.subr.mxu0 %v1242
        %2099 = vmatpush1.msra.mxu0 %v1241
        %2100 = vmatprep.subr.mxu0 %v1239
        %2101 = vmatpush1.msra.mxu0 %v1238
        %2102 = vmatprep.subr.mxu0 %v1236
        %2103 = vmatpush1.msra.mxu0 %v1235
        %2104 = vmatprep.subr.mxu0 %v1233
        %2105 = vmatpush1.msra.mxu0 %v1232
        %2106 = vmatprep.subr.mxu0 %v1230
        %2107 = vmatpush1.msra.mxu0 %v1229
        %2108 = vmatprep.subr.mxu0 %v1227
        %2109 = vmatpush1.msra.mxu0 %v1226
        %2110 = vmatprep.subr.mxu0 %v1224
        %2111 = vmatpush1.msra.mxu0 %v1223
        %2112 = vmatprep.subr.mxu0 %v1221
        %2113 = vmatpush1.msra.mxu0 %v1220
        %2114 = vmatprep.subr.mxu0 %v1218
        %2115 = vmatpush1.msra.mxu0 %v1217
        %2116 = vmatprep.subr.mxu0 %v1215
        %2117 = vmatpush1.msra.mxu0 %v1214
        %2118 = vmatprep.subr.mxu0 %v1212
        %2119 = vmatpush1.msra.mxu0 %v1211
        %2120 = vmatprep.subr.mxu0 %v1209
        %2121 = vmatpush1.msra.mxu0 %v1208
        %2122 = vmatprep.subr.mxu0 %v1206
        %2123 = vmatpush1.msra.mxu0 %v1205
        %2124 = vmatprep.subr.mxu0 %v1203
        %2125 = vmatpush1.msra.mxu0 %v1202
        %2126 = vmatprep.subr.mxu0 %v1200
        %2127 = vmatpush1.msra.mxu0 %v1199
        %2128 = vmatprep.subr.mxu0 0.0
        %2129 = vmatpush2.msra.mxu0 0.0
        %2130 = vmatprep.subr.mxu0 0.0
        %2131 = vmatpush2.msra.mxu0 0.0
        %2132 = vmatprep.subr.mxu0 0.0
        %2133 = vmatpush2.msra.mxu0 0.0
        %2134 = vmatprep.subr.mxu0 0.0
        %2135 = vmatpush2.msra.mxu0 0.0
        %2136 = vmatprep.subr.mxu0 0.0
        %2137 = vmatpush2.msra.mxu0 0.0
        %2138 = vmatprep.subr.mxu0 0.0
        %2139 = vmatpush2.msra.mxu0 0.0
        %2140 = vmatprep.subr.mxu0 0.0
        %2141 = vmatpush2.msra.mxu0 0.0
        %2142 = vmatprep.subr.mxu0 0.0
        %2143 = vmatpush2.msra.mxu0 0.0
        %2144 = vmatprep.subr.mxu0 0.0
        %2145 = vmatpush2.msra.mxu0 0.0
        %2146 = vmatprep.subr.mxu0 0.0
        %2147 = vmatpush2.msra.mxu0 0.0
        %2148 = vmatprep.subr.mxu0 0.0
        %2149 = vmatpush2.msra.mxu0 0.0
        %2150 = vmatprep.subr.mxu0 0.0
        %2151 = vmatpush2.msra.mxu0 0.0
        %2152 = vmatprep.subr.mxu0 0.0
        %2153 = vmatpush2.msra.mxu0 0.0
        %2154 = vmatprep.subr.mxu0 0.0
        %2155 = vmatpush2.msra.mxu0 0.0
        %2156 = vmatprep.subr.mxu0 0.0
        %2157 = vmatpush2.msra.mxu0 0.0
        %2158 = vmatprep.subr.mxu0 0.0
        %2159 = vmatpush2.msra.mxu0 0.0
        %2160 = vmatprep.mubr.f32.mxu0 0.0
        %2161 = vmatmul.mubr.f32.gmra.mxu0 %v2095
        %v2162 = vpop.f32.mrf.mxu0
        %v2163 = vadd.f32 0.0, %v2162
        %v2164 = vpop.f32.mrf.mxu0
        %v2165 = vadd.f32 0.0, %v2164
        %2166 = vdwg.mxu0
        %2167 = vmatprep.subr.mxu0 0.0
        %2168 = vmatpush1.msra.mxu0 %v1246
        %2169 = vmatprep.subr.mxu0 0.0
        %2170 = vmatpush1.msra.mxu0 %v1243
        %2171 = vmatprep.subr.mxu0 0.0
        %2172 = vmatpush1.msra.mxu0 %v1240
        %2173 = vmatprep.subr.mxu0 0.0
        %2174 = vmatpush1.msra.mxu0 %v1237
        %2175 = vmatprep.subr.mxu0 0.0
        %2176 = vmatpush1.msra.mxu0 %v1234
        %2177 = vmatprep.subr.mxu0 0.0
        %2178 = vmatpush1.msra.mxu0 %v1231
        %2179 = vmatprep.subr.mxu0 0.0
        %2180 = vmatpush1.msra.mxu0 %v1228
        %2181 = vmatprep.subr.mxu0 0.0
        %2182 = vmatpush1.msra.mxu0 %v1225
        %2183 = vmatprep.subr.mxu0 0.0
        %2184 = vmatpush1.msra.mxu0 %v1222
        %2185 = vmatprep.subr.mxu0 0.0
        %2186 = vmatpush1.msra.mxu0 %v1219
        %2187 = vmatprep.subr.mxu0 0.0
        %2188 = vmatpush1.msra.mxu0 %v1216
        %2189 = vmatprep.subr.mxu0 0.0
        %2190 = vmatpush1.msra.mxu0 %v1213
        %2191 = vmatprep.subr.mxu0 0.0
        %2192 = vmatpush1.msra.mxu0 %v1210
        %2193 = vmatprep.subr.mxu0 0.0
        %2194 = vmatpush1.msra.mxu0 %v1207
        %2195 = vmatprep.subr.mxu0 0.0
        %2196 = vmatpush1.msra.mxu0 %v1204
        %2197 = vmatprep.subr.mxu0 0.0
        %2198 = vmatpush1.msra.mxu0 %v1201
        %2199 = vmatprep.subr.mxu0 0.0
        %2200 = vmatpush2.msra.mxu0 0.0
        %2201 = vmatprep.subr.mxu0 0.0
        %2202 = vmatpush2.msra.mxu0 0.0
        %2203 = vmatprep.subr.mxu0 0.0
        %2204 = vmatpush2.msra.mxu0 0.0
        %2205 = vmatprep.subr.mxu0 0.0
        %2206 = vmatpush2.msra.mxu0 0.0
        %2207 = vmatprep.subr.mxu0 0.0
        %2208 = vmatpush2.msra.mxu0 0.0
        %2209 = vmatprep.subr.mxu0 0.0
        %2210 = vmatpush2.msra.mxu0 0.0
        %2211 = vmatprep.subr.mxu0 0.0
        %2212 = vmatpush2.msra.mxu0 0.0
        %2213 = vmatprep.subr.mxu0 0.0
        %2214 = vmatpush2.msra.mxu0 0.0
        %2215 = vmatprep.subr.mxu0 0.0
        %2216 = vmatpush2.msra.mxu0 0.0
        %2217 = vmatprep.subr.mxu0 0.0
        %2218 = vmatpush2.msra.mxu0 0.0
        %2219 = vmatprep.subr.mxu0 0.0
        %2220 = vmatpush2.msra.mxu0 0.0
        %2221 = vmatprep.subr.mxu0 0.0
        %2222 = vmatpush2.msra.mxu0 0.0
        %2223 = vmatprep.subr.mxu0 0.0
        %2224 = vmatpush2.msra.mxu0 0.0
        %2225 = vmatprep.subr.mxu0 0.0
        %2226 = vmatpush2.msra.mxu0 0.0
        %2227 = vmatprep.subr.mxu0 0.0
        %2228 = vmatpush2.msra.mxu0 0.0
        %2229 = vmatprep.subr.mxu0 0.0
        %2230 = vmatpush2.msra.mxu0 0.0
        %2231 = vmatprep.mubr.f32.mxu0 0.0
        %2232 = vmatmul.mubr.f32.gmra.mxu0 %v2095
        %v2233 = vpop.f32.mrf.mxu0
        %v2234 = vadd.f32 0.0, %v2233
        %v2235 = vpop.f32.mrf.mxu0
        %2236 = vdwg.mxu0
        %2237 = vmatprep.subr.mxu0 %v1419
        %2238 = vmatpush1.msra.mxu0 %v1418
        %2239 = vmatprep.subr.mxu0 %v1417
        %2240 = vmatpush1.msra.mxu0 %v1416
        %2241 = vmatprep.subr.mxu0 %v1415
        %2242 = vmatpush1.msra.mxu0 %v1414
        %2243 = vmatprep.subr.mxu0 %v1413
        %2244 = vmatpush1.msra.mxu0 %v1412
        %2245 = vmatprep.subr.mxu0 %v1411
        %2246 = vmatpush1.msra.mxu0 %v1410
        %2247 = vmatprep.subr.mxu0 %v1409
        %2248 = vmatpush1.msra.mxu0 %v1408
        %2249 = vmatprep.subr.mxu0 %v1407
        %2250 = vmatpush1.msra.mxu0 %v1406
        %2251 = vmatprep.subr.mxu0 %v1405
        %2252 = vmatpush1.msra.mxu0 %v1404
        %2253 = vmatprep.subr.mxu0 %v1403
        %2254 = vmatpush1.msra.mxu0 %v1402
        %2255 = vmatprep.subr.mxu0 %v1401
        %2256 = vmatpush1.msra.mxu0 %v1400
        %2257 = vmatprep.subr.mxu0 %v1399
        %2258 = vmatpush1.msra.mxu0 %v1398
        %2259 = vmatprep.subr.mxu0 %v1397
        %2260 = vmatpush1.msra.mxu0 %v1396
        %2261 = vmatprep.subr.mxu0 %v1395
        %2262 = vmatpush1.msra.mxu0 %v1394
        %2263 = vmatprep.subr.mxu0 %v1393
        %2264 = vmatpush1.msra.mxu0 %v1392
        %2265 = vmatprep.subr.mxu0 %v1391
        %2266 = vmatpush1.msra.mxu0 %v1390
        %2267 = vmatprep.subr.mxu0 %v1389
        %2268 = vmatpush1.msra.mxu0 %v1388
        %2269 = vmatprep.subr.mxu0 0.0
        %2270 = vmatpush2.msra.mxu0 0.0
        %2271 = vmatprep.subr.mxu0 0.0
        %2272 = vmatpush2.msra.mxu0 0.0
        %2273 = vmatprep.subr.mxu0 0.0
        %2274 = vmatpush2.msra.mxu0 0.0
        %2275 = vmatprep.subr.mxu0 0.0
        %2276 = vmatpush2.msra.mxu0 0.0
        %2277 = vmatprep.subr.mxu0 0.0
        %2278 = vmatpush2.msra.mxu0 0.0
        %2279 = vmatprep.subr.mxu0 0.0
        %2280 = vmatpush2.msra.mxu0 0.0
        %2281 = vmatprep.subr.mxu0 0.0
        %2282 = vmatpush2.msra.mxu0 0.0
        %2283 = vmatprep.subr.mxu0 0.0
        %2284 = vmatpush2.msra.mxu0 0.0
        %2285 = vmatprep.subr.mxu0 0.0
        %2286 = vmatpush2.msra.mxu0 0.0
        %2287 = vmatprep.subr.mxu0 0.0
        %2288 = vmatpush2.msra.mxu0 0.0
        %2289 = vmatprep.subr.mxu0 0.0
        %2290 = vmatpush2.msra.mxu0 0.0
        %2291 = vmatprep.subr.mxu0 0.0
        %2292 = vmatpush2.msra.mxu0 0.0
        %2293 = vmatprep.subr.mxu0 0.0
        %2294 = vmatpush2.msra.mxu0 0.0
        %2295 = vmatprep.subr.mxu0 0.0
        %2296 = vmatpush2.msra.mxu0 0.0
        %2297 = vmatprep.subr.mxu0 0.0
        %2298 = vmatpush2.msra.mxu0 0.0
        %2299 = vmatprep.subr.mxu0 0.0
        %2300 = vmatpush2.msra.mxu0 0.0
        %2301 = vmatprep.mubr.f32.mxu0 0.0
        %2302 = vmatmul.mubr.f32.gmra.mxu0 %v1597
        %v2303 = vpop.f32.mrf.mxu0
        %v2304 = vadd.f32 0.0, %v2303
        %v2305 = vpop.f32.mrf.mxu0
        %v2306 = vadd.f32 0.0, %v2305
        %2307 = vdwg.mxu0
        %v2308 = vadd.f32 %v2163, %v2304
        %v2309 = vxor.u32 %v2308, 2147483648
        %v2310 = vmul.f32 %v2309, 1.442695
        %v2311 = vpow.pop %v2310
        %v2312 = vadd.f32 %v2311, 1.0
        %v2313 = vrcp.pop %v2312
        %v2314 = vmul.f32 1.0, %v2313
        %v2315 = vadd.f32 %v2165, %v2306
        %v2316 = vxor.u32 %v2315, 2147483648
        %v2317 = vmul.f32 %v2316, 1.442695
        %v2318 = vpow.pop %v2317
        %v2319 = vadd.f32 %v2318, 1.0
        %v2320 = vrcp.pop %v2319
        %v2321 = vmul.f32 1.0, %v2320
        %v2322 = vmul.f32 %v2321, %v1597
        %2323 = vmatprep.subr.mxu0 0.0
        %2324 = vmatpush1.msra.mxu0 %v1521
        %2325 = vmatprep.subr.mxu0 0.0
        %2326 = vmatpush1.msra.mxu0 %v1520
        %2327 = vmatprep.subr.mxu0 0.0
        %2328 = vmatpush1.msra.mxu0 %v1519
        %2329 = vmatprep.subr.mxu0 0.0
        %2330 = vmatpush1.msra.mxu0 %v1518
        %2331 = vmatprep.subr.mxu0 0.0
        %2332 = vmatpush1.msra.mxu0 %v1517
        %2333 = vmatprep.subr.mxu0 0.0
        %2334 = vmatpush1.msra.mxu0 %v1516
        %2335 = vmatprep.subr.mxu0 0.0
        %2336 = vmatpush1.msra.mxu0 %v1515
        %2337 = vmatprep.subr.mxu0 0.0
        %2338 = vmatpush1.msra.mxu0 %v1514
        %2339 = vmatprep.subr.mxu0 0.0
        %2340 = vmatpush1.msra.mxu0 %v1513
        %2341 = vmatprep.subr.mxu0 0.0
        %2342 = vmatpush1.msra.mxu0 %v1512
        %2343 = vmatprep.subr.mxu0 0.0
        %2344 = vmatpush1.msra.mxu0 %v1511
        %2345 = vmatprep.subr.mxu0 0.0
        %2346 = vmatpush1.msra.mxu0 %v1510
        %2347 = vmatprep.subr.mxu0 0.0
        %2348 = vmatpush1.msra.mxu0 %v1509
        %2349 = vmatprep.subr.mxu0 0.0
        %2350 = vmatpush1.msra.mxu0 %v1508
        %2351 = vmatprep.subr.mxu0 0.0
        %2352 = vmatpush1.msra.mxu0 %v1507
        %2353 = vmatprep.subr.mxu0 0.0
        %2354 = vmatpush1.msra.mxu0 %v1506
        %2355 = vmatprep.subr.mxu0 0.0
        %2356 = vmatpush2.msra.mxu0 0.0
        %2357 = vmatprep.subr.mxu0 0.0
        %2358 = vmatpush2.msra.mxu0 0.0
        %2359 = vmatprep.subr.mxu0 0.0
        %2360 = vmatpush2.msra.mxu0 0.0
        %2361 = vmatprep.subr.mxu0 0.0
        %2362 = vmatpush2.msra.mxu0 0.0
        %2363 = vmatprep.subr.mxu0 0.0
        %2364 = vmatpush2.msra.mxu0 0.0
        %2365 = vmatprep.subr.mxu0 0.0
        %2366 = vmatpush2.msra.mxu0 0.0
        %2367 = vmatprep.subr.mxu0 0.0
        %2368 = vmatpush2.msra.mxu0 0.0
        %2369 = vmatprep.subr.mxu0 0.0
        %2370 = vmatpush2.msra.mxu0 0.0
        %2371 = vmatprep.subr.mxu0 0.0
        %2372 = vmatpush2.msra.mxu0 0.0
        %2373 = vmatprep.subr.mxu0 0.0
        %2374 = vmatpush2.msra.mxu0 0.0
        %2375 = vmatprep.subr.mxu0 0.0
        %2376 = vmatpush2.msra.mxu0 0.0
        %2377 = vmatprep.subr.mxu0 0.0
        %2378 = vmatpush2.msra.mxu0 0.0
        %2379 = vmatprep.subr.mxu0 0.0
        %2380 = vmatpush2.msra.mxu0 0.0
        %2381 = vmatprep.subr.mxu0 0.0
        %2382 = vmatpush2.msra.mxu0 0.0
        %2383 = vmatprep.subr.mxu0 0.0
        %2384 = vmatpush2.msra.mxu0 0.0
        %2385 = vmatprep.subr.mxu0 0.0
        %2386 = vmatpush2.msra.mxu0 0.0
        %2387 = vmatprep.mubr.f32.mxu0 0.0
        %2388 = vmatmul.mubr.f32.gmra.mxu0 %v2322
        %v2389 = vpop.f32.mrf.mxu0
        %v2390 = vadd.f32 0.0, %v2389
        %v2391 = vpop.f32.mrf.mxu0
        %2392 = vdwg.mxu0
        %v2393 = vadd.f32 %v2234, %v2390
        %v2394 = vtanh.pop %v2393
        %v2395 = vsub.f32 1.0, %v2314
        %v2396 = vmul.f32 %v2395, %v1597
        %v2397 = vmul.f32 %v2314, %v2394
        %v2398 = vadd.f32 %v2396, %v2397
        %2399 = vst [vmem:[%s577] sm:$0xff] %v2398
        %s2400 = sand.u32 %s306, 1
        %s2401 = scalar_lea.sflag [#allocation4], %s2400
        %s2402 = sand.u32 %s306, 1
        %s2403 = smul.addr %s2402, 8
        %s2404 = scalar_lea.vmem [#allocation19], %s2403
        // Predicated region
        $region109: #{tpu_custom_call.1} parent=67 // pred_check
          %p2405 = pneg %p316
        $region110: #{tpu_custom_call.1} parent=67 // pred_check_branch
          %2407 = sbr.rel (%p2405) target = $region112
        $region111: #{tpu_custom_call.1} parent=67 // pred_region
          %s2409 = ssub.s32 128, 128
          %2410 = vsyncadd %s2401, %s2409
          %s2411 = smul.addr %s36, 128
          %s2412 = scalar_lea.hbm %s12, %s2411
          %s2414 = sshll.u32 %s2404, 4
          %s2415 = int_to_ptr.vmem [resolvable:$true] %s2414
          %2417 = dma.vmem_to_hbm [thread:$0]  %s2415, 128, %s2412, %s2401
        $region112: #{tpu_custom_call.1} parent=67 // pred_fallthru
          _
      $region68: #{tpu_custom_call.1} parent=5 // pred_fallthru
        _
      %p2418 = scmp.le.s32.totalorder 2, %s31
      // Predicated region
      $region113: #{tpu_custom_call.1} parent=5 // pred_check
        %p2419 = pneg %p2418
      $region114: #{tpu_custom_call.1} parent=5 // pred_check_branch
        %2421 = sbr.rel (%p2419) target = $region116
      $region115: #{tpu_custom_call.1} parent=5 // pred_region
        %s2422 = ssub.s32 %s31, 2
        // Predicated region
        $region117: #{tpu_custom_call.1} parent=115 // pred_check
          %p2423 = pneg %p322
        $region118: #{tpu_custom_call.1} parent=115 // pred_check_branch
          %2425 = sbr.rel (%p2423) target = $region120
        $region119: #{tpu_custom_call.1} parent=115 // pred_region
          %s2426 = sand.u32 %s307, 1
          %s2427 = scalar_lea.sflag [#allocation4], %s2426
          %s2428 = sand.u32 %s307, 1
          %s2429 = smul.addr %s2428, 8
          %s2430 = scalar_lea.vmem [#allocation19], %s2429
          %2431 = dma.done %s2427, 128
        $region120: #{tpu_custom_call.1} parent=115 // pred_fallthru
          _
      $region116: #{tpu_custom_call.1} parent=5 // pred_fallthru
        _
    $region6: #{tpu_custom_call.1} parent=1 // loop_footer
      %s35 = sadd.s32 1, %s31
    $region7: #{tpu_custom_call.1} parent=1 // loop_footer_branch
      %30 = sbr.rel target = $region3
    $region8: #{tpu_custom_call.1} parent=1 // loop_exit
      _
    %2432 = vsyncpa [#allocation3], 1
    %s2433 = scalar_lea.sflag [#allocation3], 1
    %2434 = vsyncpa %s2433, 1
    %2435 = vsyncpa [#allocation6], 1
    %s2436 = scalar_lea.sflag [#allocation6], 1
    %2437 = vsyncpa %s2436, 1
    %2438 = vsyncpa [#allocation9], 1
    %2439 = vsyncpa [#allocation12], 1
    %2440 = vsyncpa [#allocation15], 1
    %2441 = vsyncpa [#allocation18], 1
    %2442 = vsyncpa [#allocation4], 1
    %s2443 = scalar_lea.sflag [#allocation4], 1
    %2444 = vsyncpa %s2443, 1

</llo_original>
